<compile_context>
chip_gen: v7x
topology: tpu7x:2x2x1
jax: 0.10.0
libtpu: 0.0.40
codegen_flags: <defaults>
</compile_context>

<pallas_src>
import functools
import math

import jax
import jax.numpy as jnp
from jax import lax
from jax.experimental import pallas as pl
from jax.experimental.pallas import tpu as pltpu


# ----------------------------------------------------------------------------
# Fused kernel: one batch element per grid step.
#   refs: xq (1,L,D), xk (1,S,D), xv (1,S,D),
#         wq (D,H*dk), bq (1,H*dk), wk, bk, wv (D,H*dv), bv,
#         wo (H*dv,d_out), bo (1,d_out)  ->  o (1,L,d_out)
#   scratch: t2 (H*L, dv)  -- head-major stack of per-head attention outputs.
# ----------------------------------------------------------------------------
def _fused_attention_layer_kernel(
    xq_ref, xk_ref, xv_ref,
    wq_ref, bq_ref, wk_ref, bk_ref, wv_ref, bv_ref,
    wo_ref, bo_ref,
    o_ref,
    t2_ref,
    *, n_heads, d_keys, d_values):
    H, dk, dv = n_heads, d_keys, d_values

    xq = xq_ref[0]                      # (L, D)
    xk = xk_ref[0]                      # (S, D)
    xv = xv_ref[0]                      # (S, D)
    L = xq.shape[0]
    d_out = o_ref.shape[-1]

    # --- fused Q/K/V projections: three MXU GEMMs, weights resident in VMEM ---
    q = jnp.dot(xq, wq_ref[...], preferred_element_type=jnp.float32) + bq_ref[...]
    k = jnp.dot(xk, wk_ref[...], preferred_element_type=jnp.float32) + bk_ref[...]
    v = jnp.dot(xv, wv_ref[...], preferred_element_type=jnp.float32) + bv_ref[...]

    scale = 1.0 / math.sqrt(dk)         # FullAttention default scale (1/sqrt(E))

    # --- per-head attention; heads are lane slices, no HBM transposes ---
    for h in range(H):
        qh = q[:, h * dk:(h + 1) * dk]                       # (L, dk)
        kh = k[:, h * dk:(h + 1) * dk]                       # (S, dk)
        vh = v[:, h * dv:(h + 1) * dv]                       # (S, dv)
        s = jnp.dot(qh, kh.T, preferred_element_type=jnp.float32) * scale  # (L, S)
        m = jnp.max(s, axis=-1, keepdims=True)
        p = jnp.exp(s - m)
        denom = jnp.sum(p, axis=-1, keepdims=True)
        attn = p * pl.reciprocal(denom, approx=True)          # EUP reciprocal
        # head-major stack: T2[h*L + l, :] = out_h[l, :]
        t2_ref[h * L:(h + 1) * L, :] = jnp.dot(
            attn, vh, preferred_element_type=jnp.float32)     # (L, dv)

    t2 = t2_ref[...]                                          # (H*L, dv)

    # --- mix=True + out_projection, fused, no lane-crossing reshape ---
    # mixed = T2.reshape(L, H*dv)   (flat head-major reshape, matches torch .view)
    # mixed[r, g*dv + d] == T2[r*H + g, d]
    # => out = bo + sum_g Sel_g @ (T2 @ Wo[g*dv:(g+1)*dv, :])
    #    with Sel_g[r, m] = (m == r*H + g)   (0/1 selection done on the MXU).
    wo = wo_ref[...]                                          # (H*dv, d_out)
    row_id = lax.broadcasted_iota(jnp.int32, (L, H * L), 0)
    col_id = lax.broadcasted_iota(jnp.int32, (L, H * L), 1)
    acc = jnp.zeros((L, d_out), jnp.float32)
    for g in range(H):
        sel = jnp.where(col_id == row_id * H + g, 1.0, 0.0)   # (L, H*L) 0/1
        yg = jnp.dot(t2, wo[g * dv:(g + 1) * dv, :],
                     preferred_element_type=jnp.float32)      # (H*L, d_out)
        acc = acc + jnp.dot(sel, yg, preferred_element_type=jnp.float32)

    o_ref[0] = (acc + bo_ref[...]).astype(o_ref.dtype)


# ----------------------------------------------------------------------------
# AttentionLayer forward (mix=True): single pallas_call, grid over batch.
# ----------------------------------------------------------------------------
def attention_layer_forward(queries, keys, values, params, n_heads):
    B, L, d_model = queries.shape
    _, S, _ = keys.shape
    H = n_heads
    h_dk = params["wq"].shape[1]
    h_dv = params["wv"].shape[1]
    dk = h_dk // H
    dv = h_dv // H
    d_out = params["wo"].shape[1]

    kernel = functools.partial(
        _fused_attention_layer_kernel, n_heads=H, d_keys=dk, d_values=dv)

    return pl.pallas_call(
        kernel,
        out_shape=jax.ShapeDtypeStruct((B, L, d_out), queries.dtype),
        grid=(B,),
        in_specs=[
            pl.BlockSpec((1, L, d_model), lambda b: (b, 0, 0)),
            pl.BlockSpec((1, S, d_model), lambda b: (b, 0, 0)),
            pl.BlockSpec((1, S, d_model), lambda b: (b, 0, 0)),
            pl.BlockSpec((d_model, h_dk), lambda b: (0, 0)),   # wq
            pl.BlockSpec((1, h_dk), lambda b: (0, 0)),         # bq
            pl.BlockSpec((d_model, h_dk), lambda b: (0, 0)),   # wk
            pl.BlockSpec((1, h_dk), lambda b: (0, 0)),         # bk
            pl.BlockSpec((d_model, h_dv), lambda b: (0, 0)),   # wv
            pl.BlockSpec((1, h_dv), lambda b: (0, 0)),         # bv
            pl.BlockSpec((h_dv, d_out), lambda b: (0, 0)),     # wo
            pl.BlockSpec((1, d_out), lambda b: (0, 0)),        # bo
        ],
        out_specs=pl.BlockSpec((1, L, d_out), lambda b: (b, 0, 0)),
        scratch_shapes=[pltpu.VMEM((H * L, dv), jnp.float32)],
        compiler_params=pltpu.CompilerParams(
            dimension_semantics=("parallel",)),   # batch shards over 2 TCs on v7x
    )(
        queries, keys, values,
        params["wq"], params["bq"].reshape(1, -1),
        params["wk"], params["bk"].reshape(1, -1),
        params["wv"], params["bv"].reshape(1, -1),
        params["wo"], params["bo"].reshape(1, -1),
    )


# ----------------------------------------------------------------------------
# Pure-JAX reference (for correctness check)
# ----------------------------------------------------------------------------
def reference_forward(queries, keys, values, params, n_heads):
    B, L, _ = queries.shape
    _, S, _ = keys.shape
    H = n_heads
    q = (queries @ params["wq"] + params["bq"]).reshape(B, L, H, -1)
    k = (keys @ params["wk"] + params["bk"]).reshape(B, S, H, -1)
    v = (values @ params["wv"] + params["bv"]).reshape(B, S, H, -1)
    E = q.shape[-1]
    scale = 1.0 / math.sqrt(E)
    scores = jnp.einsum("blhe,bshe->bhls", q, k)
    A = jax.nn.softmax(scale * scores, axis=-1)
    V = jnp.einsum("bhls,bshd->blhd", A, v)                      # (B, L, H, dv)
    mixed = jnp.transpose(V, (0, 2, 1, 3)).reshape(B, L, -1)     # mix=True .view
    return mixed @ params["wo"] + params["bo"]


# ----------------------------------------------------------------------------
# Parameter construction (deterministic, synthetic, (in, out)-layout weights)
# ----------------------------------------------------------------------------
def init_params(key, d_model, n_heads, d_out=14):
    d_keys = d_model // n_heads
    d_values = d_model // n_heads
    ks = jax.random.split(key, 8)

    def u(k, shape, fan_in):
        bound = 1.0 / math.sqrt(fan_in)
        return jax.random.uniform(k, shape, jnp.float32, -bound, bound)

    return {
        "wq": u(ks[0], (d_model, d_keys * n_heads), d_model),
        "bq": u(ks[1], (d_keys * n_heads,), d_model),
        "wk": u(ks[2], (d_model, d_keys * n_heads), d_model),
        "bk": u(ks[3], (d_keys * n_heads,), d_model),
        "wv": u(ks[4], (d_model, d_values * n_heads), d_model),
        "bv": u(ks[5], (d_values * n_heads,), d_model),
        "wo": u(ks[6], (d_values * n_heads, d_out), d_values * n_heads),
        "bo": u(ks[7], (d_out,), d_values * n_heads),
    }


if __name__ == "__main__":
    B, L, S, d_model, n_heads = 2, 8, 8, 32, 4

    key = jax.random.PRNGKey(0)
    k_params, k_q, k_k, k_v = jax.random.split(key, 4)
    params = init_params(k_params, d_model, n_heads)

    queries = jax.random.normal(k_q, (B, L, d_model), jnp.float32)
    keys = jax.random.normal(k_k, (B, S, d_model), jnp.float32)
    values = jax.random.normal(k_v, (B, S, d_model), jnp.float32)

    out = attention_layer_forward(queries, keys, values, params, n_heads)
    out = jax.block_until_ready(out)

    ref = reference_forward(queries, keys, values, params, n_heads)
    assert out.shape == (B, L, 14), out.shape
    # Tolerance allows for the approximate EUP reciprocal in the in-kernel
    # softmax; everything else matches the f32 reference to ~1e-4.
    err = float(jnp.max(jnp.abs(out - ref)))
    assert jnp.allclose(out, ref, atol=5e-3, rtol=5e-3), f"mismatch, max err={err}"

    print("KERNEL_OK")
</pallas_src>

<mosaic_0001>
module attributes {stable_mosaic.version = 11 : i64} {
  func.func @_fused_attention_layer_kernel(%arg0: i32, %arg1: memref<1x8x32xf32, #tpu.memory_space<vmem>>, %arg2: memref<1x8x32xf32, #tpu.memory_space<vmem>>, %arg3: memref<1x8x32xf32, #tpu.memory_space<vmem>>, %arg4: memref<32x32xf32, #tpu.memory_space<vmem>>, %arg5: memref<1x32xf32, #tpu.memory_space<vmem>>, %arg6: memref<32x32xf32, #tpu.memory_space<vmem>>, %arg7: memref<1x32xf32, #tpu.memory_space<vmem>>, %arg8: memref<32x32xf32, #tpu.memory_space<vmem>>, %arg9: memref<1x32xf32, #tpu.memory_space<vmem>>, %arg10: memref<32x14xf32, #tpu.memory_space<vmem>>, %arg11: memref<1x14xf32, #tpu.memory_space<vmem>>, %arg12: memref<1x8x14xf32, #tpu.memory_space<vmem>>, %arg13: memref<32x8xf32, #tpu.memory_space<vmem>>) attributes {dimension_semantics = [#tpu.dimension_semantics<parallel>], iteration_bounds = array<i64: 2>, scalar_prefetch = 0 : i64, scratch_operands = 1 : i64, tpu.core_type = #tpu.core_type<tc>, window_params = [{transform_indices = @transform_0, window_bounds = array<i64: 1, 8, 32>}, {transform_indices = @transform_1, window_bounds = array<i64: 1, 8, 32>}, {transform_indices = @transform_2, window_bounds = array<i64: 1, 8, 32>}, {pipeline_mode = #tpu.pipeline_mode<synchronous>, transform_indices = @transform_3, window_bounds = array<i64: 32, 32>}, {pipeline_mode = #tpu.pipeline_mode<synchronous>, transform_indices = @transform_4, window_bounds = array<i64: 1, 32>}, {pipeline_mode = #tpu.pipeline_mode<synchronous>, transform_indices = @transform_5, window_bounds = array<i64: 32, 32>}, {pipeline_mode = #tpu.pipeline_mode<synchronous>, transform_indices = @transform_6, window_bounds = array<i64: 1, 32>}, {pipeline_mode = #tpu.pipeline_mode<synchronous>, transform_indices = @transform_7, window_bounds = array<i64: 32, 32>}, {pipeline_mode = #tpu.pipeline_mode<synchronous>, transform_indices = @transform_8, window_bounds = array<i64: 1, 32>}, {pipeline_mode = #tpu.pipeline_mode<synchronous>, transform_indices = @transform_9, window_bounds = array<i64: 32, 14>}, {pipeline_mode = #tpu.pipeline_mode<synchronous>, transform_indices = @transform_10, window_bounds = array<i64: 1, 14>}, {transform_indices = @transform_11, window_bounds = array<i64: 1, 8, 14>}]} {
    %c0 = arith.constant 0 : index
    %c0_0 = arith.constant 0 : index
    %c0_1 = arith.constant 0 : index
    %0 = vector.load %arg1[%c0, %c0_0, %c0_1] : memref<1x8x32xf32, #tpu.memory_space<vmem>>, vector<1x8x32xf32>
    %1 = vector.shape_cast %0 : vector<1x8x32xf32> to vector<8x32xf32>
    %c0_2 = arith.constant 0 : index
    %c0_3 = arith.constant 0 : index
    %c0_4 = arith.constant 0 : index
    %2 = vector.load %arg2[%c0_2, %c0_3, %c0_4] : memref<1x8x32xf32, #tpu.memory_space<vmem>>, vector<1x8x32xf32>
    %3 = vector.shape_cast %2 : vector<1x8x32xf32> to vector<8x32xf32>
    %c0_5 = arith.constant 0 : index
    %c0_6 = arith.constant 0 : index
    %c0_7 = arith.constant 0 : index
    %4 = vector.load %arg3[%c0_5, %c0_6, %c0_7] : memref<1x8x32xf32, #tpu.memory_space<vmem>>, vector<1x8x32xf32>
    %5 = vector.shape_cast %4 : vector<1x8x32xf32> to vector<8x32xf32>
    %c0_8 = arith.constant 0 : index
    %c0_9 = arith.constant 0 : index
    %6 = vector.load %arg4[%c0_8, %c0_9] : memref<32x32xf32, #tpu.memory_space<vmem>>, vector<32x32xf32>
    %cst = arith.constant dense<0.000000e+00> : vector<8x32xf32>
    %7 = tpu.matmul %1, %6, %cst {dimension_numbers = #tpu.dot_dimension_numbers<[1], [0], [0], [1], [0, 0, 1, 1], [], []>} : vector<8x32xf32>, vector<32x32xf32>, vector<8x32xf32> -> vector<8x32xf32>
    %c0_10 = arith.constant 0 : index
    %c0_11 = arith.constant 0 : index
    %8 = vector.load %arg5[%c0_10, %c0_11] : memref<1x32xf32, #tpu.memory_space<vmem>>, vector<1x32xf32>
    %9 = vector.broadcast %8 : vector<1x32xf32> to vector<8x32xf32>
    %10 = arith.addf %7, %9 : vector<8x32xf32>
    %c0_12 = arith.constant 0 : index
    %c0_13 = arith.constant 0 : index
    %11 = vector.load %arg6[%c0_12, %c0_13] : memref<32x32xf32, #tpu.memory_space<vmem>>, vector<32x32xf32>
    %cst_14 = arith.constant dense<0.000000e+00> : vector<8x32xf32>
    %12 = tpu.matmul %3, %11, %cst_14 {dimension_numbers = #tpu.dot_dimension_numbers<[1], [0], [0], [1], [0, 0, 1, 1], [], []>} : vector<8x32xf32>, vector<32x32xf32>, vector<8x32xf32> -> vector<8x32xf32>
    %c0_15 = arith.constant 0 : index
    %c0_16 = arith.constant 0 : index
    %13 = vector.load %arg7[%c0_15, %c0_16] : memref<1x32xf32, #tpu.memory_space<vmem>>, vector<1x32xf32>
    %14 = vector.broadcast %13 : vector<1x32xf32> to vector<8x32xf32>
    %15 = arith.addf %12, %14 : vector<8x32xf32>
    %c0_17 = arith.constant 0 : index
    %c0_18 = arith.constant 0 : index
    %16 = vector.load %arg8[%c0_17, %c0_18] : memref<32x32xf32, #tpu.memory_space<vmem>>, vector<32x32xf32>
    %cst_19 = arith.constant dense<0.000000e+00> : vector<8x32xf32>
    %17 = tpu.matmul %5, %16, %cst_19 {dimension_numbers = #tpu.dot_dimension_numbers<[1], [0], [0], [1], [0, 0, 1, 1], [], []>} : vector<8x32xf32>, vector<32x32xf32>, vector<8x32xf32> -> vector<8x32xf32>
    %c0_20 = arith.constant 0 : index
    %c0_21 = arith.constant 0 : index
    %18 = vector.load %arg9[%c0_20, %c0_21] : memref<1x32xf32, #tpu.memory_space<vmem>>, vector<1x32xf32>
    %19 = vector.broadcast %18 : vector<1x32xf32> to vector<8x32xf32>
    %20 = arith.addf %17, %19 : vector<8x32xf32>
    %21 = vector.extract_strided_slice %10 {offsets = [0, 0], sizes = [8, 8], strides = [1, 1]} : vector<8x32xf32> to vector<8x8xf32>
    %22 = vector.extract_strided_slice %15 {offsets = [0, 0], sizes = [8, 8], strides = [1, 1]} : vector<8x32xf32> to vector<8x8xf32>
    %23 = vector.extract_strided_slice %20 {offsets = [0, 0], sizes = [8, 8], strides = [1, 1]} : vector<8x32xf32> to vector<8x8xf32>
    %24 = tpu.transpose %22, [1, 0] : vector<8x8xf32> -> vector<8x8xf32>
    %cst_22 = arith.constant dense<0.000000e+00> : vector<8x8xf32>
    %25 = tpu.matmul %21, %24, %cst_22 {dimension_numbers = #tpu.dot_dimension_numbers<[1], [0], [0], [1], [0, 0, 1, 1], [], []>} : vector<8x8xf32>, vector<8x8xf32>, vector<8x8xf32> -> vector<8x8xf32>
    %cst_23 = arith.constant 0.353553385 : f32
    %26 = vector.broadcast %cst_23 : f32 to vector<8x8xf32>
    %27 = arith.mulf %25, %26 : vector<8x8xf32>
    %cst_24 = arith.constant dense<0xFF800000> : vector<8xf32>
    %28 = vector.multi_reduction <maximumf>, %27, %cst_24 [1] : vector<8x8xf32> to vector<8xf32>
    %29 = vector.shape_cast %28 : vector<8xf32> to vector<8x1xf32>
    %30 = vector.broadcast %29 : vector<8x1xf32> to vector<8x8xf32>
    %31 = arith.subf %27, %30 : vector<8x8xf32>
    %32 = math.exp %31 : vector<8x8xf32>
    %cst_25 = arith.constant dense<0.000000e+00> : vector<8xf32>
    %33 = vector.multi_reduction <add>, %32, %cst_25 [1] : vector<8x8xf32> to vector<8xf32>
    %34 = vector.shape_cast %33 : vector<8xf32> to vector<8x1xf32>
    %35 = tpu.reciprocal %34 {approx = true} : vector<8x1xf32> -> vector<8x1xf32>
    %36 = vector.broadcast %35 : vector<8x1xf32> to vector<8x8xf32>
    %37 = arith.mulf %32, %36 : vector<8x8xf32>
    %cst_26 = arith.constant dense<0.000000e+00> : vector<8x8xf32>
    %38 = tpu.matmul %37, %23, %cst_26 {dimension_numbers = #tpu.dot_dimension_numbers<[1], [0], [0], [1], [0, 0, 1, 1], [], []>} : vector<8x8xf32>, vector<8x8xf32>, vector<8x8xf32> -> vector<8x8xf32>
    %c0_27 = arith.constant 0 : index
    %c0_28 = arith.constant 0 : index
    %39 = vector.load %arg13[%c0_27, %c0_28] : memref<32x8xf32, #tpu.memory_space<vmem>>, vector<8x8xf32>
    tpu.vector_store %arg13[%c0_27, %c0_28], %38 {strides = array<i32>} : memref<32x8xf32, #tpu.memory_space<vmem>>, vector<8x8xf32>,
    %40 = vector.extract_strided_slice %10 {offsets = [0, 8], sizes = [8, 8], strides = [1, 1]} : vector<8x32xf32> to vector<8x8xf32>
    %41 = vector.extract_strided_slice %15 {offsets = [0, 8], sizes = [8, 8], strides = [1, 1]} : vector<8x32xf32> to vector<8x8xf32>
    %42 = vector.extract_strided_slice %20 {offsets = [0, 8], sizes = [8, 8], strides = [1, 1]} : vector<8x32xf32> to vector<8x8xf32>
    %43 = tpu.transpose %41, [1, 0] : vector<8x8xf32> -> vector<8x8xf32>
    %cst_29 = arith.constant dense<0.000000e+00> : vector<8x8xf32>
    %44 = tpu.matmul %40, %43, %cst_29 {dimension_numbers = #tpu.dot_dimension_numbers<[1], [0], [0], [1], [0, 0, 1, 1], [], []>} : vector<8x8xf32>, vector<8x8xf32>, vector<8x8xf32> -> vector<8x8xf32>
    %cst_30 = arith.constant 0.353553385 : f32
    %45 = vector.broadcast %cst_30 : f32 to vector<8x8xf32>
    %46 = arith.mulf %44, %45 : vector<8x8xf32>
    %cst_31 = arith.constant dense<0xFF800000> : vector<8xf32>
    %47 = vector.multi_reduction <maximumf>, %46, %cst_31 [1] : vector<8x8xf32> to vector<8xf32>
    %48 = vector.shape_cast %47 : vector<8xf32> to vector<8x1xf32>
    %49 = vector.broadcast %48 : vector<8x1xf32> to vector<8x8xf32>
    %50 = arith.subf %46, %49 : vector<8x8xf32>
    %51 = math.exp %50 : vector<8x8xf32>
    %cst_32 = arith.constant dense<0.000000e+00> : vector<8xf32>
    %52 = vector.multi_reduction <add>, %51, %cst_32 [1] : vector<8x8xf32> to vector<8xf32>
    %53 = vector.shape_cast %52 : vector<8xf32> to vector<8x1xf32>
    %54 = tpu.reciprocal %53 {approx = true} : vector<8x1xf32> -> vector<8x1xf32>
    %55 = vector.broadcast %54 : vector<8x1xf32> to vector<8x8xf32>
    %56 = arith.mulf %51, %55 : vector<8x8xf32>
    %cst_33 = arith.constant dense<0.000000e+00> : vector<8x8xf32>
    %57 = tpu.matmul %56, %42, %cst_33 {dimension_numbers = #tpu.dot_dimension_numbers<[1], [0], [0], [1], [0, 0, 1, 1], [], []>} : vector<8x8xf32>, vector<8x8xf32>, vector<8x8xf32> -> vector<8x8xf32>
    %c8 = arith.constant 8 : index
    %c0_34 = arith.constant 0 : index
    %58 = vector.load %arg13[%c8, %c0_34] : memref<32x8xf32, #tpu.memory_space<vmem>>, vector<8x8xf32>
    tpu.vector_store %arg13[%c8, %c0_34], %57 {strides = array<i32>} : memref<32x8xf32, #tpu.memory_space<vmem>>, vector<8x8xf32>,
    %59 = vector.extract_strided_slice %10 {offsets = [0, 16], sizes = [8, 8], strides = [1, 1]} : vector<8x32xf32> to vector<8x8xf32>
    %60 = vector.extract_strided_slice %15 {offsets = [0, 16], sizes = [8, 8], strides = [1, 1]} : vector<8x32xf32> to vector<8x8xf32>
    %61 = vector.extract_strided_slice %20 {offsets = [0, 16], sizes = [8, 8], strides = [1, 1]} : vector<8x32xf32> to vector<8x8xf32>
    %62 = tpu.transpose %60, [1, 0] : vector<8x8xf32> -> vector<8x8xf32>
    %cst_35 = arith.constant dense<0.000000e+00> : vector<8x8xf32>
    %63 = tpu.matmul %59, %62, %cst_35 {dimension_numbers = #tpu.dot_dimension_numbers<[1], [0], [0], [1], [0, 0, 1, 1], [], []>} : vector<8x8xf32>, vector<8x8xf32>, vector<8x8xf32> -> vector<8x8xf32>
    %cst_36 = arith.constant 0.353553385 : f32
    %64 = vector.broadcast %cst_36 : f32 to vector<8x8xf32>
    %65 = arith.mulf %63, %64 : vector<8x8xf32>
    %cst_37 = arith.constant dense<0xFF800000> : vector<8xf32>
    %66 = vector.multi_reduction <maximumf>, %65, %cst_37 [1] : vector<8x8xf32> to vector<8xf32>
    %67 = vector.shape_cast %66 : vector<8xf32> to vector<8x1xf32>
    %68 = vector.broadcast %67 : vector<8x1xf32> to vector<8x8xf32>
    %69 = arith.subf %65, %68 : vector<8x8xf32>
    %70 = math.exp %69 : vector<8x8xf32>
    %cst_38 = arith.constant dense<0.000000e+00> : vector<8xf32>
    %71 = vector.multi_reduction <add>, %70, %cst_38 [1] : vector<8x8xf32> to vector<8xf32>
    %72 = vector.shape_cast %71 : vector<8xf32> to vector<8x1xf32>
    %73 = tpu.reciprocal %72 {approx = true} : vector<8x1xf32> -> vector<8x1xf32>
    %74 = vector.broadcast %73 : vector<8x1xf32> to vector<8x8xf32>
    %75 = arith.mulf %70, %74 : vector<8x8xf32>
    %cst_39 = arith.constant dense<0.000000e+00> : vector<8x8xf32>
    %76 = tpu.matmul %75, %61, %cst_39 {dimension_numbers = #tpu.dot_dimension_numbers<[1], [0], [0], [1], [0, 0, 1, 1], [], []>} : vector<8x8xf32>, vector<8x8xf32>, vector<8x8xf32> -> vector<8x8xf32>
    %c16 = arith.constant 16 : index
    %c0_40 = arith.constant 0 : index
    %77 = vector.load %arg13[%c16, %c0_40] : memref<32x8xf32, #tpu.memory_space<vmem>>, vector<8x8xf32>
    tpu.vector_store %arg13[%c16, %c0_40], %76 {strides = array<i32>} : memref<32x8xf32, #tpu.memory_space<vmem>>, vector<8x8xf32>,
    %78 = vector.extract_strided_slice %10 {offsets = [0, 24], sizes = [8, 8], strides = [1, 1]} : vector<8x32xf32> to vector<8x8xf32>
    %79 = vector.extract_strided_slice %15 {offsets = [0, 24], sizes = [8, 8], strides = [1, 1]} : vector<8x32xf32> to vector<8x8xf32>
    %80 = vector.extract_strided_slice %20 {offsets = [0, 24], sizes = [8, 8], strides = [1, 1]} : vector<8x32xf32> to vector<8x8xf32>
    %81 = tpu.transpose %79, [1, 0] : vector<8x8xf32> -> vector<8x8xf32>
    %cst_41 = arith.constant dense<0.000000e+00> : vector<8x8xf32>
    %82 = tpu.matmul %78, %81, %cst_41 {dimension_numbers = #tpu.dot_dimension_numbers<[1], [0], [0], [1], [0, 0, 1, 1], [], []>} : vector<8x8xf32>, vector<8x8xf32>, vector<8x8xf32> -> vector<8x8xf32>
    %cst_42 = arith.constant 0.353553385 : f32
    %83 = vector.broadcast %cst_42 : f32 to vector<8x8xf32>
    %84 = arith.mulf %82, %83 : vector<8x8xf32>
    %cst_43 = arith.constant dense<0xFF800000> : vector<8xf32>
    %85 = vector.multi_reduction <maximumf>, %84, %cst_43 [1] : vector<8x8xf32> to vector<8xf32>
    %86 = vector.shape_cast %85 : vector<8xf32> to vector<8x1xf32>
    %87 = vector.broadcast %86 : vector<8x1xf32> to vector<8x8xf32>
    %88 = arith.subf %84, %87 : vector<8x8xf32>
    %89 = math.exp %88 : vector<8x8xf32>
    %cst_44 = arith.constant dense<0.000000e+00> : vector<8xf32>
    %90 = vector.multi_reduction <add>, %89, %cst_44 [1] : vector<8x8xf32> to vector<8xf32>
    %91 = vector.shape_cast %90 : vector<8xf32> to vector<8x1xf32>
    %92 = tpu.reciprocal %91 {approx = true} : vector<8x1xf32> -> vector<8x1xf32>
    %93 = vector.broadcast %92 : vector<8x1xf32> to vector<8x8xf32>
    %94 = arith.mulf %89, %93 : vector<8x8xf32>
    %cst_45 = arith.constant dense<0.000000e+00> : vector<8x8xf32>
    %95 = tpu.matmul %94, %80, %cst_45 {dimension_numbers = #tpu.dot_dimension_numbers<[1], [0], [0], [1], [0, 0, 1, 1], [], []>} : vector<8x8xf32>, vector<8x8xf32>, vector<8x8xf32> -> vector<8x8xf32>
    %c24 = arith.constant 24 : index
    %c0_46 = arith.constant 0 : index
    %96 = vector.load %arg13[%c24, %c0_46] : memref<32x8xf32, #tpu.memory_space<vmem>>, vector<8x8xf32>
    tpu.vector_store %arg13[%c24, %c0_46], %95 {strides = array<i32>} : memref<32x8xf32, #tpu.memory_space<vmem>>, vector<8x8xf32>,
    %c0_47 = arith.constant 0 : index
    %c0_48 = arith.constant 0 : index
    %97 = vector.load %arg13[%c0_47, %c0_48] : memref<32x8xf32, #tpu.memory_space<vmem>>, vector<32x8xf32>
    %c0_49 = arith.constant 0 : index
    %c0_50 = arith.constant 0 : index
    %98 = vector.load %arg10[%c0_49, %c0_50] : memref<32x14xf32, #tpu.memory_space<vmem>>, vector<32x14xf32>
    %99 = tpu.iota {dimensions = array<i32: 0>} : vector<8x32xi32>
    %100 = tpu.iota {dimensions = array<i32: 1>} : vector<8x32xi32>
    %cst_51 = arith.constant 0.000000e+00 : f32
    %101 = vector.broadcast %cst_51 : f32 to vector<8x14xf32>
    %c4_i32 = arith.constant 4 : i32
    %102 = vector.broadcast %c4_i32 : i32 to vector<8x32xi32>
    %103 = arith.muli %99, %102 : vector<8x32xi32>
    %c0_i32 = arith.constant 0 : i32
    %104 = vector.broadcast %c0_i32 : i32 to vector<8x32xi32>
    %105 = arith.addi %103, %104 : vector<8x32xi32>
    %106 = arith.cmpi eq, %100, %105 : vector<8x32xi32>
    %cst_52 = arith.constant 1.000000e+00 : f32
    %cst_53 = arith.constant 0.000000e+00 : f32
    %107 = vector.broadcast %cst_52 : f32 to vector<8x32xf32>
    %108 = vector.broadcast %cst_53 : f32 to vector<8x32xf32>
    %109 = arith.select %106, %107, %108 : vector<8x32xi1>, vector<8x32xf32>
    %110 = vector.extract_strided_slice %98 {offsets = [0, 0], sizes = [8, 14], strides = [1, 1]} : vector<32x14xf32> to vector<8x14xf32>
    %cst_54 = arith.constant dense<0.000000e+00> : vector<32x14xf32>
    %111 = tpu.matmul %97, %110, %cst_54 {dimension_numbers = #tpu.dot_dimension_numbers<[1], [0], [0], [1], [0, 0, 1, 1], [], []>} : vector<32x8xf32>, vector<8x14xf32>, vector<32x14xf32> -> vector<32x14xf32>
    %cst_55 = arith.constant dense<0.000000e+00> : vector<8x14xf32>
    %112 = tpu.matmul %109, %111, %cst_55 {dimension_numbers = #tpu.dot_dimension_numbers<[1], [0], [0], [1], [0, 0, 1, 1], [], []>} : vector<8x32xf32>, vector<32x14xf32>, vector<8x14xf32> -> vector<8x14xf32>
    %113 = arith.addf %101, %112 : vector<8x14xf32>
    %c4_i32_56 = arith.constant 4 : i32
    %114 = vector.broadcast %c4_i32_56 : i32 to vector<8x32xi32>
    %115 = arith.muli %99, %114 : vector<8x32xi32>
    %c1_i32 = arith.constant 1 : i32
    %116 = vector.broadcast %c1_i32 : i32 to vector<8x32xi32>
    %117 = arith.addi %115, %116 : vector<8x32xi32>
    %118 = arith.cmpi eq, %100, %117 : vector<8x32xi32>
    %cst_57 = arith.constant 1.000000e+00 : f32
    %cst_58 = arith.constant 0.000000e+00 : f32
    %119 = vector.broadcast %cst_57 : f32 to vector<8x32xf32>
    %120 = vector.broadcast %cst_58 : f32 to vector<8x32xf32>
    %121 = arith.select %118, %119, %120 : vector<8x32xi1>, vector<8x32xf32>
    %122 = vector.extract_strided_slice %98 {offsets = [8, 0], sizes = [8, 14], strides = [1, 1]} : vector<32x14xf32> to vector<8x14xf32>
    %cst_59 = arith.constant dense<0.000000e+00> : vector<32x14xf32>
    %123 = tpu.matmul %97, %122, %cst_59 {dimension_numbers = #tpu.dot_dimension_numbers<[1], [0], [0], [1], [0, 0, 1, 1], [], []>} : vector<32x8xf32>, vector<8x14xf32>, vector<32x14xf32> -> vector<32x14xf32>
    %cst_60 = arith.constant dense<0.000000e+00> : vector<8x14xf32>
    %124 = tpu.matmul %121, %123, %cst_60 {dimension_numbers = #tpu.dot_dimension_numbers<[1], [0], [0], [1], [0, 0, 1, 1], [], []>} : vector<8x32xf32>, vector<32x14xf32>, vector<8x14xf32> -> vector<8x14xf32>
    %125 = arith.addf %113, %124 : vector<8x14xf32>
    %c4_i32_61 = arith.constant 4 : i32
    %126 = vector.broadcast %c4_i32_61 : i32 to vector<8x32xi32>
    %127 = arith.muli %99, %126 : vector<8x32xi32>
    %c2_i32 = arith.constant 2 : i32
    %128 = vector.broadcast %c2_i32 : i32 to vector<8x32xi32>
    %129 = arith.addi %127, %128 : vector<8x32xi32>
    %130 = arith.cmpi eq, %100, %129 : vector<8x32xi32>
    %cst_62 = arith.constant 1.000000e+00 : f32
    %cst_63 = arith.constant 0.000000e+00 : f32
    %131 = vector.broadcast %cst_62 : f32 to vector<8x32xf32>
    %132 = vector.broadcast %cst_63 : f32 to vector<8x32xf32>
    %133 = arith.select %130, %131, %132 : vector<8x32xi1>, vector<8x32xf32>
    %134 = vector.extract_strided_slice %98 {offsets = [16, 0], sizes = [8, 14], strides = [1, 1]} : vector<32x14xf32> to vector<8x14xf32>
    %cst_64 = arith.constant dense<0.000000e+00> : vector<32x14xf32>
    %135 = tpu.matmul %97, %134, %cst_64 {dimension_numbers = #tpu.dot_dimension_numbers<[1], [0], [0], [1], [0, 0, 1, 1], [], []>} : vector<32x8xf32>, vector<8x14xf32>, vector<32x14xf32> -> vector<32x14xf32>
    %cst_65 = arith.constant dense<0.000000e+00> : vector<8x14xf32>
    %136 = tpu.matmul %133, %135, %cst_65 {dimension_numbers = #tpu.dot_dimension_numbers<[1], [0], [0], [1], [0, 0, 1, 1], [], []>} : vector<8x32xf32>, vector<32x14xf32>, vector<8x14xf32> -> vector<8x14xf32>
    %137 = arith.addf %125, %136 : vector<8x14xf32>
    %c4_i32_66 = arith.constant 4 : i32
    %138 = vector.broadcast %c4_i32_66 : i32 to vector<8x32xi32>
    %139 = arith.muli %99, %138 : vector<8x32xi32>
    %c3_i32 = arith.constant 3 : i32
    %140 = vector.broadcast %c3_i32 : i32 to vector<8x32xi32>
    %141 = arith.addi %139, %140 : vector<8x32xi32>
    %142 = arith.cmpi eq, %100, %141 : vector<8x32xi32>
    %cst_67 = arith.constant 1.000000e+00 : f32
    %cst_68 = arith.constant 0.000000e+00 : f32
    %143 = vector.broadcast %cst_67 : f32 to vector<8x32xf32>
    %144 = vector.broadcast %cst_68 : f32 to vector<8x32xf32>
    %145 = arith.select %142, %143, %144 : vector<8x32xi1>, vector<8x32xf32>
    %146 = vector.extract_strided_slice %98 {offsets = [24, 0], sizes = [8, 14], strides = [1, 1]} : vector<32x14xf32> to vector<8x14xf32>
    %cst_69 = arith.constant dense<0.000000e+00> : vector<32x14xf32>
    %147 = tpu.matmul %97, %146, %cst_69 {dimension_numbers = #tpu.dot_dimension_numbers<[1], [0], [0], [1], [0, 0, 1, 1], [], []>} : vector<32x8xf32>, vector<8x14xf32>, vector<32x14xf32> -> vector<32x14xf32>
    %cst_70 = arith.constant dense<0.000000e+00> : vector<8x14xf32>
    %148 = tpu.matmul %145, %147, %cst_70 {dimension_numbers = #tpu.dot_dimension_numbers<[1], [0], [0], [1], [0, 0, 1, 1], [], []>} : vector<8x32xf32>, vector<32x14xf32>, vector<8x14xf32> -> vector<8x14xf32>
    %149 = arith.addf %137, %148 : vector<8x14xf32>
    %c0_71 = arith.constant 0 : index
    %c0_72 = arith.constant 0 : index
    %150 = vector.load %arg11[%c0_71, %c0_72] : memref<1x14xf32, #tpu.memory_space<vmem>>, vector<1x14xf32>
    %151 = vector.broadcast %150 : vector<1x14xf32> to vector<8x14xf32>
    %152 = arith.addf %149, %151 : vector<8x14xf32>
    %c0_73 = arith.constant 0 : index
    %c0_74 = arith.constant 0 : index
    %c0_75 = arith.constant 0 : index
    %153 = vector.load %arg12[%c0_73, %c0_74, %c0_75] : memref<1x8x14xf32, #tpu.memory_space<vmem>>, vector<1x8x14xf32>
    %154 = vector.shape_cast %153 : vector<1x8x14xf32> to vector<8x14xf32>
    %155 = vector.shape_cast %152 : vector<8x14xf32> to vector<1x8x14xf32>
    tpu.vector_store %arg12[%c0_73, %c0_74, %c0_75], %155 {strides = array<i32>} : memref<1x8x14xf32, #tpu.memory_space<vmem>>, vector<1x8x14xf32>,
    return
  }
  func.func @transform_0(%arg0: i32) -> (i32, i32, i32) {
    %c0_i32 = arith.constant 0 : i32
    %c0_i32_0 = arith.constant 0 : i32
    %c0_i32_1 = arith.constant 0 : i32
    return %arg0, %c0_i32, %c0_i32_0 : i32, i32, i32
  }
  func.func @transform_1(%arg0: i32) -> (i32, i32, i32) {
    %c0_i32 = arith.constant 0 : i32
    %c0_i32_0 = arith.constant 0 : i32
    %c0_i32_1 = arith.constant 0 : i32
    return %arg0, %c0_i32, %c0_i32_0 : i32, i32, i32
  }
  func.func @transform_2(%arg0: i32) -> (i32, i32, i32) {
    %c0_i32 = arith.constant 0 : i32
    %c0_i32_0 = arith.constant 0 : i32
    %c0_i32_1 = arith.constant 0 : i32
    return %arg0, %c0_i32, %c0_i32_0 : i32, i32, i32
  }
  func.func @transform_3(%arg0: i32) -> (i32, i32) {
    %c0_i32 = arith.constant 0 : i32
    %c0_i32_0 = arith.constant 0 : i32
    %c0_i32_1 = arith.constant 0 : i32
    return %c0_i32, %c0_i32_0 : i32, i32
  }
  func.func @transform_4(%arg0: i32) -> (i32, i32) {
    %c0_i32 = arith.constant 0 : i32
    %c0_i32_0 = arith.constant 0 : i32
    %c0_i32_1 = arith.constant 0 : i32
    return %c0_i32, %c0_i32_0 : i32, i32
  }
  func.func @transform_5(%arg0: i32) -> (i32, i32) {
    %c0_i32 = arith.constant 0 : i32
    %c0_i32_0 = arith.constant 0 : i32
    %c0_i32_1 = arith.constant 0 : i32
    return %c0_i32, %c0_i32_0 : i32, i32
  }
  func.func @transform_6(%arg0: i32) -> (i32, i32) {
    %c0_i32 = arith.constant 0 : i32
    %c0_i32_0 = arith.constant 0 : i32
    %c0_i32_1 = arith.constant 0 : i32
    return %c0_i32, %c0_i32_0 : i32, i32
  }
  func.func @transform_7(%arg0: i32) -> (i32, i32) {
    %c0_i32 = arith.constant 0 : i32
    %c0_i32_0 = arith.constant 0 : i32
    %c0_i32_1 = arith.constant 0 : i32
    return %c0_i32, %c0_i32_0 : i32, i32
  }
  func.func @transform_8(%arg0: i32) -> (i32, i32) {
    %c0_i32 = arith.constant 0 : i32
    %c0_i32_0 = arith.constant 0 : i32
    %c0_i32_1 = arith.constant 0 : i32
    return %c0_i32, %c0_i32_0 : i32, i32
  }
  func.func @transform_9(%arg0: i32) -> (i32, i32) {
    %c0_i32 = arith.constant 0 : i32
    %c0_i32_0 = arith.constant 0 : i32
    %c0_i32_1 = arith.constant 0 : i32
    return %c0_i32, %c0_i32_0 : i32, i32
  }
  func.func @transform_10(%arg0: i32) -> (i32, i32) {
    %c0_i32 = arith.constant 0 : i32
    %c0_i32_0 = arith.constant 0 : i32
    %c0_i32_1 = arith.constant 0 : i32
    return %c0_i32, %c0_i32_0 : i32, i32
  }
  func.func @transform_11(%arg0: i32) -> (i32, i32, i32) {
    %c0_i32 = arith.constant 0 : i32
    %c0_i32_0 = arith.constant 0 : i32
    %c0_i32_1 = arith.constant 0 : i32
    return %arg0, %c0_i32, %c0_i32_0 : i32, i32, i32
  }
}

</mosaic_0001>

<llo_original>
// kernel: tpu_custom_call.1
$region0: #{tpu_custom_call.1}
  #allocation0 [shape = 'u32[]', space=smem, size = 0x4, offset = 0x4, fixed_abs, tag = 'smem constant byte address 0x4 - core index']
  #allocation1 [shape = 'u32[144,128]{1,0:T(1,128)}', space=vmem, size = 0x12000, scoped, tag = 'internal scratch']
  #allocation2 [shape = 'f32[32,8]{1,0:T(8,128)}', space=vmem, size = 0x4000, scoped, tag = 'scratch operand']
  %s0 = inlined_call_operand.hbm [shape: f32[2,8,32], index: 0, kind: input, shape index: {}]
  %s1 = inlined_call_operand.hbm [shape: f32[2,8,32], index: 1, kind: input, shape index: {}]
  %s2 = inlined_call_operand.hbm [shape: f32[2,8,32], index: 2, kind: input, shape index: {}]
  %s3 = inlined_call_operand.vmem [shape: f32[32,32], index: 3, kind: input, shape index: {}]
  %s4 = inlined_call_operand.vmem [shape: f32[1,32], index: 4, kind: input, shape index: {}]
  %s5 = inlined_call_operand.vmem [shape: f32[32,32], index: 5, kind: input, shape index: {}]
  %s6 = inlined_call_operand.vmem [shape: f32[1,32], index: 6, kind: input, shape index: {}]
  %s7 = inlined_call_operand.hbm [shape: f32[32,32], index: 7, kind: input, shape index: {}]
  %s8 = inlined_call_operand.hbm [shape: f32[1,32], index: 8, kind: input, shape index: {}]
  %s9 = inlined_call_operand.vmem [shape: f32[32,14], index: 9, kind: input, shape index: {}]
  %s10 = inlined_call_operand.vmem [shape: f32[1,14], index: 10, kind: input, shape index: {}]
  %s11 = inlined_call_operand.hbm [shape: f32[2,8,14], index: 11, kind: output, shape index: {}]
  %s12 = sld [smem:[#allocation0]]
  $region97: #{tpu_custom_call.1} parent=0
    _
  %s14 = ssub.s32 1, %s12
  %s15 = scalar_select 0, %s14, %s12
  $region1: #{tpu_custom_call.1} parent=0
    #allocation3 [shape = 'u8[8192]{0}', space=vmem, size = 0x2000, scoped, tag = 'input window, operand 0']
    #allocation4 [shape = 's32[2]{0}', space=sflag, size = 0x8, scoped, tag = 'scoped memory for tpu_custom_call.1']
    #allocation5 [shape = 's32[2]{0}', space=sflag, size = 0x8, scoped, tag = 'scoped memory for tpu_custom_call.1']
    #allocation6 [shape = 'u8[8192]{0}', space=vmem, size = 0x2000, scoped, tag = 'input window, operand 1']
    #allocation7 [shape = 's32[2]{0}', space=sflag, size = 0x8, scoped, tag = 'scoped memory for tpu_custom_call.1']
    #allocation8 [shape = 'u8[8192]{0}', space=vmem, size = 0x2000, scoped, tag = 'input window, operand 2']
    #allocation9 [shape = 'u8[16384]{0}', space=vmem, size = 0x4000, scoped, tag = 'input window, operand 7, single buffered']
    #allocation10 [shape = 's32[1]{0}', space=sflag, size = 0x4, scoped, tag = 'scoped memory for tpu_custom_call.1']
    #allocation11 [shape = 'u8[512]{0}', space=vmem, size = 0x400, scoped, tag = 'input window, operand 8, single buffered']
    #allocation12 [shape = 'u8[8192]{0}', space=vmem, size = 0x2000, scoped, tag = 'output window, operand 0']
    %16 = vsyncpa [#allocation4], 0
    %s17 = scalar_lea.sflag [#allocation4], 1
    %18 = vsyncpa %s17, 0
    %19 = vsyncpa [#allocation7], 0
    %s20 = scalar_lea.sflag [#allocation7], 1
    %21 = vsyncpa %s20, 0
    %22 = vsyncpa [#allocation10], 0
    %23 = vsyncpa [#allocation5], 0
    %s24 = scalar_lea.sflag [#allocation5], 1
    %25 = vsyncpa %s24, 0
    loop: start=0, step=1, limit=4
    $region2: #{tpu_custom_call.1} parent=1 // loop_pre_header
      _
    $region3: #{tpu_custom_call.1} parent=1 // loop_header
      %s27 = sphi 0, %s31
      %p28 = scmp.ge.s32.totalorder %s27, 4
      %s37 = sphi 0, %s39
      %s40 = sphi 0, %s37
      %s41 = sphi 0, %s40
      %s57 = sphi 0, %s41
      %s63 = sphi 0, %s65
      %s66 = sphi 0, %s63
      %s67 = sphi 0, %s66
      %s83 = sphi 0, %s67
      %s89 = sphi 0, %s91
      %s92 = sphi 0, %s89
      %s93 = sphi 0, %s92
      %s109 = sphi 0, %s93
      %s113 = sphi 0, %s113
      %s115 = sphi 0, %s113
      %s116 = sphi 0, %s115
      %s130 = sphi 0, %s116
      %s134 = sphi 0, %s134
      %s136 = sphi 0, %s134
      %s137 = sphi 0, %s136
      %s151 = sphi 0, %s137
      %s155 = sphi 0, %s155
      %s157 = sphi 0, %s155
      %s158 = sphi 0, %s157
      %s172 = sphi 0, %s158
      %s176 = sphi 0, %s176
      %s178 = sphi 0, %s176
      %s179 = sphi 0, %s178
      %s193 = sphi 0, %s179
      %s197 = sphi 0, %s197
      %s199 = sphi 0, %s197
      %s200 = sphi 0, %s199
      %s214 = sphi 0, %s200
      %s218 = sphi 0, %s218
      %s220 = sphi 0, %s218
      %s221 = sphi 0, %s220
      %s235 = sphi 0, %s221
      %s239 = sphi 0, %s239
      %s241 = sphi 0, %s239
      %s242 = sphi 0, %s241
      %s256 = sphi 0, %s242
      %s260 = sphi 0, %s260
      %s262 = sphi 0, %s260
      %s263 = sphi 0, %s262
      %s277 = sphi 0, %s263
      %s283 = sphi 0, %s285
      %s286 = sphi 0, %s283
      %s287 = sphi 0, %s286
      %s303 = sphi 0, %s287
    $region4: #{tpu_custom_call.1} parent=1 // loop_header_branch
      %30 = sbr.rel (%p28) target = $region8
    $region5: #{tpu_custom_call.1} parent=1 // loop_body
      %s32 = ssub.s32 %s27, 1
      %s33 = ssub.s32 %s27, 2
      %s34 = sadd.s32 %s27, 1
      %s35 = ssub.s32 %s27, %s34
      %p36 = scmp.eq.s32.totalorder %s35, 0
      %s38 = sadd.s32 %s37, 1
      %s39 = scalar_select %p36, %s37, %s38
      %p42 = pneg %p36
      %p43 = scmp.eq.s32.totalorder %s27, 1
      %p44 = por %p42, %p43
      %p45 = scmp.ne.s32.totalorder %s37, %s40
      %p46 = scmp.eq.s32.totalorder %s27, 0
      %p47 = por %p45, %p46
      %p48 = scmp.ne.s32.totalorder %s37, %s40
      %p49 = scmp.eq.s32.totalorder %s32, 1
      %p50 = por %p48, %p49
      %p51 = scmp.ne.s32.totalorder %s40, %s41
      %p52 = scmp.eq.s32.totalorder %s32, 0
      %p53 = por %p51, %p52
      %p54 = scmp.ne.s32.totalorder %s40, %s41
      %p55 = scmp.eq.s32.totalorder %s33, 1
      %p56 = por %p54, %p55
      %p58 = scmp.ne.s32.totalorder %s41, %s57
      %p59 = scmp.eq.s32.totalorder %s33, 0
      %p60 = por %p58, %p59
      %s61 = ssub.s32 %s27, %s34
      %p62 = scmp.eq.s32.totalorder %s61, 0
      %s64 = sadd.s32 %s63, 1
      %s65 = scalar_select %p62, %s63, %s64
      %p68 = pneg %p62
      %p69 = scmp.eq.s32.totalorder %s27, 1
      %p70 = por %p68, %p69
      %p71 = scmp.ne.s32.totalorder %s63, %s66
      %p72 = scmp.eq.s32.totalorder %s27, 0
      %p73 = por %p71, %p72
      %p74 = scmp.ne.s32.totalorder %s63, %s66
      %p75 = scmp.eq.s32.totalorder %s32, 1
      %p76 = por %p74, %p75
      %p77 = scmp.ne.s32.totalorder %s66, %s67
      %p78 = scmp.eq.s32.totalorder %s32, 0
      %p79 = por %p77, %p78
      %p80 = scmp.ne.s32.totalorder %s66, %s67
      %p81 = scmp.eq.s32.totalorder %s33, 1
      %p82 = por %p80, %p81
      %p84 = scmp.ne.s32.totalorder %s67, %s83
      %p85 = scmp.eq.s32.totalorder %s33, 0
      %p86 = por %p84, %p85
      %s87 = ssub.s32 %s27, %s34
      %p88 = scmp.eq.s32.totalorder %s87, 0
      %s90 = sadd.s32 %s89, 1
      %s91 = scalar_select %p88, %s89, %s90
      %p94 = pneg %p88
      %p95 = scmp.eq.s32.totalorder %s27, 1
      %p96 = por %p94, %p95
      %p97 = scmp.ne.s32.totalorder %s89, %s92
      %p98 = scmp.eq.s32.totalorder %s27, 0
      %p99 = por %p97, %p98
      %p100 = scmp.ne.s32.totalorder %s89, %s92
      %p101 = scmp.eq.s32.totalorder %s32, 1
      %p102 = por %p100, %p101
      %p103 = scmp.ne.s32.totalorder %s92, %s93
      %p104 = scmp.eq.s32.totalorder %s32, 0
      %p105 = por %p103, %p104
      %p106 = scmp.ne.s32.totalorder %s92, %s93
      %p107 = scmp.eq.s32.totalorder %s33, 1
      %p108 = por %p106, %p107
      %p110 = scmp.ne.s32.totalorder %s93, %s109
      %p111 = scmp.eq.s32.totalorder %s33, 0
      %p112 = por %p110, %p111
      %s114 = sadd.s32 %s113, 1
      %p117 = scmp.eq.s32.totalorder %s27, 1
      %p118 = scmp.ne.s32.totalorder %s113, %s115
      %p119 = scmp.eq.s32.totalorder %s27, 0
      %p120 = por %p118, %p119
      %p121 = scmp.ne.s32.totalorder %s113, %s115
      %p122 = scmp.eq.s32.totalorder %s32, 1
      %p123 = por %p121, %p122
      %p124 = scmp.ne.s32.totalorder %s115, %s116
      %p125 = scmp.eq.s32.totalorder %s32, 0
      %p126 = por %p124, %p125
      %p127 = scmp.ne.s32.totalorder %s115, %s116
      %p128 = scmp.eq.s32.totalorder %s33, 1
      %p129 = por %p127, %p128
      %p131 = scmp.ne.s32.totalorder %s116, %s130
      %p132 = scmp.eq.s32.totalorder %s33, 0
      %p133 = por %p131, %p132
      %s135 = sadd.s32 %s134, 1
      %p138 = scmp.eq.s32.totalorder %s27, 1
      %p139 = scmp.ne.s32.totalorder %s134, %s136
      %p140 = scmp.eq.s32.totalorder %s27, 0
      %p141 = por %p139, %p140
      %p142 = scmp.ne.s32.totalorder %s134, %s136
      %p143 = scmp.eq.s32.totalorder %s32, 1
      %p144 = por %p142, %p143
      %p145 = scmp.ne.s32.totalorder %s136, %s137
      %p146 = scmp.eq.s32.totalorder %s32, 0
      %p147 = por %p145, %p146
      %p148 = scmp.ne.s32.totalorder %s136, %s137
      %p149 = scmp.eq.s32.totalorder %s33, 1
      %p150 = por %p148, %p149
      %p152 = scmp.ne.s32.totalorder %s137, %s151
      %p153 = scmp.eq.s32.totalorder %s33, 0
      %p154 = por %p152, %p153
      %s156 = sadd.s32 %s155, 1
      %p159 = scmp.eq.s32.totalorder %s27, 1
      %p160 = scmp.ne.s32.totalorder %s155, %s157
      %p161 = scmp.eq.s32.totalorder %s27, 0
      %p162 = por %p160, %p161
      %p163 = scmp.ne.s32.totalorder %s155, %s157
      %p164 = scmp.eq.s32.totalorder %s32, 1
      %p165 = por %p163, %p164
      %p166 = scmp.ne.s32.totalorder %s157, %s158
      %p167 = scmp.eq.s32.totalorder %s32, 0
      %p168 = por %p166, %p167
      %p169 = scmp.ne.s32.totalorder %s157, %s158
      %p170 = scmp.eq.s32.totalorder %s33, 1
      %p171 = por %p169, %p170
      %p173 = scmp.ne.s32.totalorder %s158, %s172
      %p174 = scmp.eq.s32.totalorder %s33, 0
      %p175 = por %p173, %p174
      %s177 = sadd.s32 %s176, 1
      %p180 = scmp.eq.s32.totalorder %s27, 1
      %p181 = scmp.ne.s32.totalorder %s176, %s178
      %p182 = scmp.eq.s32.totalorder %s27, 0
      %p183 = por %p181, %p182
      %p184 = scmp.ne.s32.totalorder %s176, %s178
      %p185 = scmp.eq.s32.totalorder %s32, 1
      %p186 = por %p184, %p185
      %p187 = scmp.ne.s32.totalorder %s178, %s179
      %p188 = scmp.eq.s32.totalorder %s32, 0
      %p189 = por %p187, %p188
      %p190 = scmp.ne.s32.totalorder %s178, %s179
      %p191 = scmp.eq.s32.totalorder %s33, 1
      %p192 = por %p190, %p191
      %p194 = scmp.ne.s32.totalorder %s179, %s193
      %p195 = scmp.eq.s32.totalorder %s33, 0
      %p196 = por %p194, %p195
      %s198 = sadd.s32 %s197, 1
      %p201 = scmp.eq.s32.totalorder %s27, 1
      %p202 = scmp.ne.s32.totalorder %s197, %s199
      %p203 = scmp.eq.s32.totalorder %s27, 0
      %p204 = por %p202, %p203
      %p205 = scmp.ne.s32.totalorder %s197, %s199
      %p206 = scmp.eq.s32.totalorder %s32, 1
      %p207 = por %p205, %p206
      %p208 = scmp.ne.s32.totalorder %s199, %s200
      %p209 = scmp.eq.s32.totalorder %s32, 0
      %p210 = por %p208, %p209
      %p211 = scmp.ne.s32.totalorder %s199, %s200
      %p212 = scmp.eq.s32.totalorder %s33, 1
      %p213 = por %p211, %p212
      %p215 = scmp.ne.s32.totalorder %s200, %s214
      %p216 = scmp.eq.s32.totalorder %s33, 0
      %p217 = por %p215, %p216
      %s219 = sadd.s32 %s218, 1
      %p222 = scmp.eq.s32.totalorder %s27, 1
      %p223 = scmp.ne.s32.totalorder %s218, %s220
      %p224 = scmp.eq.s32.totalorder %s27, 0
      %p225 = por %p223, %p224
      %p226 = scmp.ne.s32.totalorder %s218, %s220
      %p227 = scmp.eq.s32.totalorder %s32, 1
      %p228 = por %p226, %p227
      %p229 = scmp.ne.s32.totalorder %s220, %s221
      %p230 = scmp.eq.s32.totalorder %s32, 0
      %p231 = por %p229, %p230
      %p232 = scmp.ne.s32.totalorder %s220, %s221
      %p233 = scmp.eq.s32.totalorder %s33, 1
      %p234 = por %p232, %p233
      %p236 = scmp.ne.s32.totalorder %s221, %s235
      %p237 = scmp.eq.s32.totalorder %s33, 0
      %p238 = por %p236, %p237
      %s240 = sadd.s32 %s239, 1
      %p243 = scmp.eq.s32.totalorder %s27, 1
      %p244 = scmp.ne.s32.totalorder %s239, %s241
      %p245 = scmp.eq.s32.totalorder %s27, 0
      %p246 = por %p244, %p245
      %p247 = scmp.ne.s32.totalorder %s239, %s241
      %p248 = scmp.eq.s32.totalorder %s32, 1
      %p249 = por %p247, %p248
      %p250 = scmp.ne.s32.totalorder %s241, %s242
      %p251 = scmp.eq.s32.totalorder %s32, 0
      %p252 = por %p250, %p251
      %p253 = scmp.ne.s32.totalorder %s241, %s242
      %p254 = scmp.eq.s32.totalorder %s33, 1
      %p255 = por %p253, %p254
      %p257 = scmp.ne.s32.totalorder %s242, %s256
      %p258 = scmp.eq.s32.totalorder %s33, 0
      %p259 = por %p257, %p258
      %s261 = sadd.s32 %s260, 1
      %p264 = scmp.eq.s32.totalorder %s27, 1
      %p265 = scmp.ne.s32.totalorder %s260, %s262
      %p266 = scmp.eq.s32.totalorder %s27, 0
      %p267 = por %p265, %p266
      %p268 = scmp.ne.s32.totalorder %s260, %s262
      %p269 = scmp.eq.s32.totalorder %s32, 1
      %p270 = por %p268, %p269
      %p271 = scmp.ne.s32.totalorder %s262, %s263
      %p272 = scmp.eq.s32.totalorder %s32, 0
      %p273 = por %p271, %p272
      %p274 = scmp.ne.s32.totalorder %s262, %s263
      %p275 = scmp.eq.s32.totalorder %s33, 1
      %p276 = por %p274, %p275
      %p278 = scmp.ne.s32.totalorder %s263, %s277
      %p279 = scmp.eq.s32.totalorder %s33, 0
      %p280 = por %p278, %p279
      %s281 = ssub.s32 %s27, %s34
      %p282 = scmp.eq.s32.totalorder %s281, 0
      %s284 = sadd.s32 %s283, 1
      %s285 = scalar_select %p282, %s283, %s284
      %p288 = pneg %p282
      %p289 = scmp.eq.s32.totalorder %s27, 1
      %p290 = por %p288, %p289
      %p291 = scmp.ne.s32.totalorder %s283, %s286
      %p292 = scmp.eq.s32.totalorder %s27, 0
      %p293 = por %p291, %p292
      %p294 = scmp.ne.s32.totalorder %s283, %s286
      %p295 = scmp.eq.s32.totalorder %s32, 1
      %p296 = por %p294, %p295
      %p297 = scmp.ne.s32.totalorder %s286, %s287
      %p298 = scmp.eq.s32.totalorder %s32, 0
      %p299 = por %p297, %p298
      %p300 = scmp.ne.s32.totalorder %s286, %s287
      %p301 = scmp.eq.s32.totalorder %s33, 1
      %p302 = por %p300, %p301
      %p304 = scmp.ne.s32.totalorder %s287, %s303
      %p305 = scmp.eq.s32.totalorder %s33, 0
      %p306 = por %p304, %p305
      %p307 = scmp.le.s32.totalorder 1, %s27
      %p308 = scmp.lt.s32.totalorder %s27, 3
      %p309 = pnand %p307, %p308
      %p310 = pneg %p309
      // Predicated region
      $region9: #{tpu_custom_call.1} parent=5 // pred_check
        _
      $region10: #{tpu_custom_call.1} parent=5 // pred_check_branch
        %312 = sbr.rel (%p309) target = $region12
      $region11: #{tpu_custom_call.1} parent=5 // pred_region
        %s313 = ssub.s32 %s27, 1
        // Predicated region
        $region13: #{tpu_custom_call.1} parent=11 // pred_check
          %p314 = pneg %p126
        $region14: #{tpu_custom_call.1} parent=11 // pred_check_branch
          %316 = sbr.rel (%p314) target = $region16
        $region15: #{tpu_custom_call.1} parent=11 // pred_region
          _
        $region16: #{tpu_custom_call.1} parent=11 // pred_fallthru
          _
        // Predicated region
        $region17: #{tpu_custom_call.1} parent=11 // pred_check
          %p317 = pneg %p147
        $region18: #{tpu_custom_call.1} parent=11 // pred_check_branch
          %319 = sbr.rel (%p317) target = $region20
        $region19: #{tpu_custom_call.1} parent=11 // pred_region
          _
        $region20: #{tpu_custom_call.1} parent=11 // pred_fallthru
          _
        // Predicated region
        $region21: #{tpu_custom_call.1} parent=11 // pred_check
          %p320 = pneg %p168
        $region22: #{tpu_custom_call.1} parent=11 // pred_check_branch
          %322 = sbr.rel (%p320) target = $region24
        $region23: #{tpu_custom_call.1} parent=11 // pred_region
          _
        $region24: #{tpu_custom_call.1} parent=11 // pred_fallthru
          _
        // Predicated region
        $region25: #{tpu_custom_call.1} parent=11 // pred_check
          %p323 = pneg %p189
        $region26: #{tpu_custom_call.1} parent=11 // pred_check_branch
          %325 = sbr.rel (%p323) target = $region28
        $region27: #{tpu_custom_call.1} parent=11 // pred_region
          _
        $region28: #{tpu_custom_call.1} parent=11 // pred_fallthru
          _
        // Predicated region
        $region29: #{tpu_custom_call.1} parent=11 // pred_check
          %p326 = pneg %p210
        $region30: #{tpu_custom_call.1} parent=11 // pred_check_branch
          %328 = sbr.rel (%p326) target = $region32
        $region31: #{tpu_custom_call.1} parent=11 // pred_region
          %s330 = ssub.s32 512, 512
          %331 = vsyncadd [#allocation10], %s330
          %s332 = sshll.u32 [#allocation9], 4
          %s333 = int_to_ptr.vmem [resolvable:$true] %s332
          %338 = dma.hbm_to_vmem [thread:$0]  %s7, 512, %s333, [#allocation10], 128, 128, 8
        $region32: #{tpu_custom_call.1} parent=11 // pred_fallthru
          _
        // Predicated region
        $region33: #{tpu_custom_call.1} parent=11 // pred_check
          %p339 = pneg %p231
        $region34: #{tpu_custom_call.1} parent=11 // pred_check_branch
          %341 = sbr.rel (%p339) target = $region36
        $region35: #{tpu_custom_call.1} parent=11 // pred_region
          %s343 = ssub.s32 16, 16
          %344 = vsyncadd [#allocation10], %s343
          %s346 = sshll.u32 [#allocation11], 4
          %s347 = int_to_ptr.vmem [resolvable:$true] %s346
          %349 = dma.hbm_to_vmem [thread:$0]  %s8, 16, %s347, [#allocation10]
        $region36: #{tpu_custom_call.1} parent=11 // pred_fallthru
          _
        // Predicated region
        $region37: #{tpu_custom_call.1} parent=11 // pred_check
          %p350 = pneg %p252
        $region38: #{tpu_custom_call.1} parent=11 // pred_check_branch
          %352 = sbr.rel (%p350) target = $region40
        $region39: #{tpu_custom_call.1} parent=11 // pred_region
          _
        $region40: #{tpu_custom_call.1} parent=11 // pred_fallthru
          _
        // Predicated region
        $region41: #{tpu_custom_call.1} parent=11 // pred_check
          %p353 = pneg %p273
        $region42: #{tpu_custom_call.1} parent=11 // pred_check_branch
          %355 = sbr.rel (%p353) target = $region44
        $region43: #{tpu_custom_call.1} parent=11 // pred_region
          _
        $region44: #{tpu_custom_call.1} parent=11 // pred_fallthru
          _
      $region12: #{tpu_custom_call.1} parent=5 // pred_fallthru
        _
      %p356 = scmp.lt.s32.totalorder %s27, 2
      // Predicated region
      $region45: #{tpu_custom_call.1} parent=5 // pred_check
        %p357 = pneg %p356
      $region46: #{tpu_custom_call.1} parent=5 // pred_check_branch
        %359 = sbr.rel (%p357) target = $region48
      $region47: #{tpu_custom_call.1} parent=5 // pred_region
        // Predicated region
        $region49: #{tpu_custom_call.1} parent=47 // pred_check
          %p360 = pneg %p47
        $region50: #{tpu_custom_call.1} parent=47 // pred_check_branch
          %362 = sbr.rel (%p360) target = $region52
        $region51: #{tpu_custom_call.1} parent=47 // pred_region
          %s363 = sand.u32 %s37, 1
          %s364 = scalar_lea.sflag [#allocation4], %s363
          %s365 = sand.u32 %s37, 1
          %s366 = smul.addr %s365, 8
          %s367 = scalar_lea.vmem [#allocation3], %s366
          %s369 = ssub.s32 128, 128
          %370 = vsyncadd %s364, %s369
          %s371 = smul.addr %s27, 128
          %s372 = scalar_lea.hbm %s0, %s371
          %s374 = sshll.u32 %s367, 4
          %s375 = int_to_ptr.vmem [resolvable:$true] %s374
          %377 = dma.hbm_to_vmem [thread:$0]  %s372, 128, %s375, %s364
        $region52: #{tpu_custom_call.1} parent=47 // pred_fallthru
          _
        // Predicated region
        $region53: #{tpu_custom_call.1} parent=47 // pred_check
          %p378 = pneg %p73
        $region54: #{tpu_custom_call.1} parent=47 // pred_check_branch
          %380 = sbr.rel (%p378) target = $region56
        $region55: #{tpu_custom_call.1} parent=47 // pred_region
          %s381 = sand.u32 %s27, 1
          %s382 = scalar_lea.sflag [#allocation7], %s381
          %s383 = sand.u32 %s63, 1
          %s384 = smul.addr %s383, 8
          %s385 = scalar_lea.vmem [#allocation6], %s384
          %s387 = ssub.s32 128, 128
          %388 = vsyncadd %s382, %s387
          %s389 = smul.addr %s27, 128
          %s390 = scalar_lea.hbm %s1, %s389
          %s392 = sshll.u32 %s385, 4
          %s393 = int_to_ptr.vmem [resolvable:$true] %s392
          %395 = dma.hbm_to_vmem [thread:$0]  %s390, 128, %s393, %s382
        $region56: #{tpu_custom_call.1} parent=47 // pred_fallthru
          _
        // Predicated region
        $region57: #{tpu_custom_call.1} parent=47 // pred_check
          %p396 = pneg %p99
        $region58: #{tpu_custom_call.1} parent=47 // pred_check_branch
          %398 = sbr.rel (%p396) target = $region60
        $region59: #{tpu_custom_call.1} parent=47 // pred_region
          %s399 = sand.u32 %s27, 1
          %s400 = scalar_lea.sflag [#allocation7], %s399
          %s401 = sand.u32 %s89, 1
          %s402 = smul.addr %s401, 8
          %s403 = scalar_lea.vmem [#allocation8], %s402
          %s405 = ssub.s32 128, 128
          %406 = vsyncadd %s400, %s405
          %s407 = smul.addr %s27, 128
          %s408 = scalar_lea.hbm %s2, %s407
          %s410 = sshll.u32 %s403, 4
          %s411 = int_to_ptr.vmem [resolvable:$true] %s410
          %413 = dma.hbm_to_vmem [thread:$0]  %s408, 128, %s411, %s400
        $region60: #{tpu_custom_call.1} parent=47 // pred_fallthru
          _
      $region48: #{tpu_custom_call.1} parent=5 // pred_fallthru
        _
      %p414 = scmp.le.s32.totalorder 1, %s27
      %p415 = scmp.lt.s32.totalorder %s27, 3
      %p416 = pnand %p414, %p415
      %p417 = pneg %p416
      // Predicated region
      $region61: #{tpu_custom_call.1} parent=5 // pred_check
        _
      $region62: #{tpu_custom_call.1} parent=5 // pred_check_branch
        %419 = sbr.rel (%p416) target = $region64
      $region63: #{tpu_custom_call.1} parent=5 // pred_region
        %s420 = ssub.s32 %s27, 1
        %s421 = sand.u32 %s40, 1
        %s422 = scalar_lea.sflag [#allocation4], %s421
        %s423 = sand.u32 %s40, 1
        %s424 = smul.addr %s423, 8
        %s425 = scalar_lea.vmem [#allocation3], %s424
        // Predicated region
        $region65: #{tpu_custom_call.1} parent=63 // pred_check
          %p426 = pneg %p53
        $region66: #{tpu_custom_call.1} parent=63 // pred_check_branch
          %428 = sbr.rel (%p426) target = $region68
        $region67: #{tpu_custom_call.1} parent=63 // pred_region
          %429 = dma.done %s422, 128
        $region68: #{tpu_custom_call.1} parent=63 // pred_fallthru
          _
        %s430 = sand.u32 %s32, 1
        %s431 = scalar_lea.sflag [#allocation7], %s430
        %s432 = sand.u32 %s66, 1
        %s433 = smul.addr %s432, 8
        %s434 = scalar_lea.vmem [#allocation6], %s433
        // Predicated region
        $region69: #{tpu_custom_call.1} parent=63 // pred_check
          %p435 = pneg %p79
        $region70: #{tpu_custom_call.1} parent=63 // pred_check_branch
          %437 = sbr.rel (%p435) target = $region72
        $region71: #{tpu_custom_call.1} parent=63 // pred_region
          %438 = dma.done %s431, 128
        $region72: #{tpu_custom_call.1} parent=63 // pred_fallthru
          _
        %s439 = sand.u32 %s32, 1
        %s440 = scalar_lea.sflag [#allocation7], %s439
        %s441 = sand.u32 %s92, 1
        %s442 = smul.addr %s441, 8
        %s443 = scalar_lea.vmem [#allocation8], %s442
        // Predicated region
        $region73: #{tpu_custom_call.1} parent=63 // pred_check
          %p444 = pneg %p105
        $region74: #{tpu_custom_call.1} parent=63 // pred_check_branch
          %446 = sbr.rel (%p444) target = $region76
        $region75: #{tpu_custom_call.1} parent=63 // pred_region
          %447 = dma.done %s440, 128
        $region76: #{tpu_custom_call.1} parent=63 // pred_fallthru
          _
        // Predicated region
        $region77: #{tpu_custom_call.1} parent=63 // pred_check
          %p448 = pneg %p210
        $region78: #{tpu_custom_call.1} parent=63 // pred_check_branch
          %450 = sbr.rel (%p448) target = $region80
        $region79: #{tpu_custom_call.1} parent=63 // pred_region
          %451 = dma.done [#allocation10], 512
        $region80: #{tpu_custom_call.1} parent=63 // pred_fallthru
          _
        // Predicated region
        $region81: #{tpu_custom_call.1} parent=63 // pred_check
          %p452 = pneg %p231
        $region82: #{tpu_custom_call.1} parent=63 // pred_check_branch
          %454 = sbr.rel (%p452) target = $region84
        $region83: #{tpu_custom_call.1} parent=63 // pred_region
          %455 = dma.done [#allocation10], 16
        $region84: #{tpu_custom_call.1} parent=63 // pred_fallthru
          _
        %s456 = sand.u32 %s40, 1
        %s457 = scalar_lea.sflag [#allocation4], %s456
        %s458 = sand.u32 %s40, 1
        %s459 = smul.addr %s458, 8
        %s460 = scalar_lea.vmem [#allocation3], %s459
        %p461 = pneg %p53
        %p462 = pneg %p50
        %s463 = sand.u32 %s32, 1
        %s464 = scalar_lea.sflag [#allocation7], %s463
        %s465 = sand.u32 %s66, 1
        %s466 = smul.addr %s465, 8
        %s467 = scalar_lea.vmem [#allocation6], %s466
        %p468 = pneg %p79
        %p469 = pneg %p76
        %s470 = sand.u32 %s32, 1
        %s471 = scalar_lea.sflag [#allocation7], %s470
        %s472 = sand.u32 %s92, 1
        %s473 = smul.addr %s472, 8
        %s474 = scalar_lea.vmem [#allocation8], %s473
        %p475 = pneg %p105
        %p476 = pneg %p102
        %p477 = pneg %p126
        %p478 = pneg %p123
        %p479 = pneg %p147
        %p480 = pneg %p144
        %p481 = pneg %p168
        %p482 = pneg %p165
        %p483 = pneg %p189
        %p484 = pneg %p186
        %p485 = pneg %p210
        %p486 = pneg %p207
        %p487 = pneg %p231
        %p488 = pneg %p228
        %p489 = pneg %p252
        %p490 = pneg %p249
        %p491 = pneg %p273
        %p492 = pneg %p270
        %p493 = pneg %p299
        %p494 = pneg %p296
        %s495 = sand.u32 %s286, 1
        %s496 = scalar_lea.sflag [#allocation5], %s495
        %s497 = sand.u32 %s286, 1
        %s498 = smul.addr %s497, 8
        %s499 = scalar_lea.vmem [#allocation12], %s498
        %v500 = vld [vmem:[%s425] sm:$0xff]
        %v501 = vld [vmem:[%s434] sm:$0xff]
        %v502 = vld [vmem:[%s443] sm:$0xff]
        %v503 = vld [vmem:[%s3] sm:$0xff]
        %v504 = vld [vmem:[%s3 + $0x8] sm:$0xff]
        %v505 = vld [vmem:[%s3 + $0x10] sm:$0xff]
        %v506 = vld [vmem:[%s3 + $0x18] sm:$0xff]
        %v507 = vld [vmem:[%s4] sm:$0x1]
        %v509 = vlaneseq
        %v510 = vshrl.u32 %v509, 7
        %v511 = vsub.s32 0, %v510
        %v512 = vrot.slane %v507, %v511
        %vm514 = vcmask 261120
        %v516 = vsel %vm514, %v500, 0
        %518 = vmatprep.subr.mxu0 0.0
        %519 = vmatpush1.msra.mxu0 %v503
        %520 = vmatprep.subr.mxu0 0.0
        %521 = vmatpush1.msra.mxu0 %v504
        %522 = vmatprep.subr.mxu0 0.0
        %523 = vmatpush1.msra.mxu0 %v505
        %524 = vmatprep.subr.mxu0 0.0
        %525 = vmatpush1.msra.mxu0 %v506
        %526 = vmatprep.subr.mxu0 0.0
        %527 = vmatpush1.msra.mxu0 0.0
        %528 = vmatprep.subr.mxu0 0.0
        %529 = vmatpush1.msra.mxu0 0.0
        %530 = vmatprep.subr.mxu0 0.0
        %531 = vmatpush1.msra.mxu0 0.0
        %532 = vmatprep.subr.mxu0 0.0
        %533 = vmatpush1.msra.mxu0 0.0
        %534 = vmatprep.subr.mxu0 0.0
        %535 = vmatpush1.msra.mxu0 0.0
        %536 = vmatprep.subr.mxu0 0.0
        %537 = vmatpush1.msra.mxu0 0.0
        %538 = vmatprep.subr.mxu0 0.0
        %539 = vmatpush1.msra.mxu0 0.0
        %540 = vmatprep.subr.mxu0 0.0
        %541 = vmatpush1.msra.mxu0 0.0
        %542 = vmatprep.subr.mxu0 0.0
        %543 = vmatpush1.msra.mxu0 0.0
        %544 = vmatprep.subr.mxu0 0.0
        %545 = vmatpush1.msra.mxu0 0.0
        %546 = vmatprep.subr.mxu0 0.0
        %547 = vmatpush1.msra.mxu0 0.0
        %548 = vmatprep.subr.mxu0 0.0
        %549 = vmatpush1.msra.mxu0 0.0
        %550 = vmatprep.subr.mxu0 0.0
        %551 = vmatpush1.msra.mxu0 0.0
        %552 = vmatprep.subr.mxu0 0.0
        %553 = vmatpush1.msra.mxu0 0.0
        %554 = vmatprep.subr.mxu0 0.0
        %555 = vmatpush1.msra.mxu0 0.0
        %556 = vmatprep.subr.mxu0 0.0
        %557 = vmatpush1.msra.mxu0 0.0
        %558 = vmatprep.subr.mxu0 0.0
        %559 = vmatpush1.msra.mxu0 0.0
        %560 = vmatprep.subr.mxu0 0.0
        %561 = vmatpush1.msra.mxu0 0.0
        %562 = vmatprep.subr.mxu0 0.0
        %563 = vmatpush1.msra.mxu0 0.0
        %564 = vmatprep.subr.mxu0 0.0
        %565 = vmatpush1.msra.mxu0 0.0
        %566 = vmatprep.subr.mxu0 0.0
        %567 = vmatpush1.msra.mxu0 0.0
        %568 = vmatprep.subr.mxu0 0.0
        %569 = vmatpush1.msra.mxu0 0.0
        %570 = vmatprep.subr.mxu0 0.0
        %571 = vmatpush1.msra.mxu0 0.0
        %572 = vmatprep.subr.mxu0 0.0
        %573 = vmatpush1.msra.mxu0 0.0
        %574 = vmatprep.subr.mxu0 0.0
        %575 = vmatpush1.msra.mxu0 0.0
        %576 = vmatprep.subr.mxu0 0.0
        %577 = vmatpush1.msra.mxu0 0.0
        %578 = vmatprep.subr.mxu0 0.0
        %579 = vmatpush1.msra.mxu0 0.0
        %580 = vmatprep.subr.mxu0 0.0
        %581 = vmatpush1.msra.mxu0 0.0
        %582 = vmatprep.mubr.f32.mxu0 0.0
        %583 = vmatmul.mubr.f32.gmra.mrb[0].mxu0 %v516
        %v584 = vpop.f32.mrb[0].mxu0
        %v585 = vadd.f32 %v512, %v584
        %v586 = vpop.f32.mrb[0].mxu0
        %587 = vdwg.mxu0
        %v588 = vld [vmem:[%s5] sm:$0xff]
        %v589 = vld [vmem:[%s5 + $0x8] sm:$0xff]
        %v590 = vld [vmem:[%s5 + $0x10] sm:$0xff]
        %v591 = vld [vmem:[%s5 + $0x18] sm:$0xff]
        %v592 = vld [vmem:[%s6] sm:$0x1]
        %v594 = vlaneseq
        %v595 = vshrl.u32 %v594, 7
        %v596 = vsub.s32 0, %v595
        %v597 = vrot.slane %v592, %v596
        %v600 = vsel %vm514, %v501, 0
        %602 = vmatprep.subr.mxu0 0.0
        %603 = vmatpush1.msra.mxu0 %v588
        %604 = vmatprep.subr.mxu0 0.0
        %605 = vmatpush1.msra.mxu0 %v589
        %606 = vmatprep.subr.mxu0 0.0
        %607 = vmatpush1.msra.mxu0 %v590
        %608 = vmatprep.subr.mxu0 0.0
        %609 = vmatpush1.msra.mxu0 %v591
        %610 = vmatprep.subr.mxu0 0.0
        %611 = vmatpush1.msra.mxu0 0.0
        %612 = vmatprep.subr.mxu0 0.0
        %613 = vmatpush1.msra.mxu0 0.0
        %614 = vmatprep.subr.mxu0 0.0
        %615 = vmatpush1.msra.mxu0 0.0
        %616 = vmatprep.subr.mxu0 0.0
        %617 = vmatpush1.msra.mxu0 0.0
        %618 = vmatprep.subr.mxu0 0.0
        %619 = vmatpush1.msra.mxu0 0.0
        %620 = vmatprep.subr.mxu0 0.0
        %621 = vmatpush1.msra.mxu0 0.0
        %622 = vmatprep.subr.mxu0 0.0
        %623 = vmatpush1.msra.mxu0 0.0
        %624 = vmatprep.subr.mxu0 0.0
        %625 = vmatpush1.msra.mxu0 0.0
        %626 = vmatprep.subr.mxu0 0.0
        %627 = vmatpush1.msra.mxu0 0.0
        %628 = vmatprep.subr.mxu0 0.0
        %629 = vmatpush1.msra.mxu0 0.0
        %630 = vmatprep.subr.mxu0 0.0
        %631 = vmatpush1.msra.mxu0 0.0
        %632 = vmatprep.subr.mxu0 0.0
        %633 = vmatpush1.msra.mxu0 0.0
        %634 = vmatprep.subr.mxu0 0.0
        %635 = vmatpush1.msra.mxu0 0.0
        %636 = vmatprep.subr.mxu0 0.0
        %637 = vmatpush1.msra.mxu0 0.0
        %638 = vmatprep.subr.mxu0 0.0
        %639 = vmatpush1.msra.mxu0 0.0
        %640 = vmatprep.subr.mxu0 0.0
        %641 = vmatpush1.msra.mxu0 0.0
        %642 = vmatprep.subr.mxu0 0.0
        %643 = vmatpush1.msra.mxu0 0.0
        %644 = vmatprep.subr.mxu0 0.0
        %645 = vmatpush1.msra.mxu0 0.0
        %646 = vmatprep.subr.mxu0 0.0
        %647 = vmatpush1.msra.mxu0 0.0
        %648 = vmatprep.subr.mxu0 0.0
        %649 = vmatpush1.msra.mxu0 0.0
        %650 = vmatprep.subr.mxu0 0.0
        %651 = vmatpush1.msra.mxu0 0.0
        %652 = vmatprep.subr.mxu0 0.0
        %653 = vmatpush1.msra.mxu0 0.0
        %654 = vmatprep.subr.mxu0 0.0
        %655 = vmatpush1.msra.mxu0 0.0
        %656 = vmatprep.subr.mxu0 0.0
        %657 = vmatpush1.msra.mxu0 0.0
        %658 = vmatprep.subr.mxu0 0.0
        %659 = vmatpush1.msra.mxu0 0.0
        %660 = vmatprep.subr.mxu0 0.0
        %661 = vmatpush1.msra.mxu0 0.0
        %662 = vmatprep.subr.mxu0 0.0
        %663 = vmatpush1.msra.mxu0 0.0
        %664 = vmatprep.subr.mxu0 0.0
        %665 = vmatpush1.msra.mxu0 0.0
        %666 = vmatprep.mubr.f32.mxu0 0.0
        %667 = vmatmul.mubr.f32.gmra.mrb[0].mxu0 %v600
        %v668 = vpop.f32.mrb[0].mxu0
        %v669 = vadd.f32 %v597, %v668
        %v670 = vpop.f32.mrb[0].mxu0
        %671 = vdwg.mxu0
        %v672 = vld [vmem:[#allocation9] sm:$0xff]
        %v673 = vld [vmem:[#allocation9 + $0x8] sm:$0xff]
        %v674 = vld [vmem:[#allocation9 + $0x10] sm:$0xff]
        %v675 = vld [vmem:[#allocation9 + $0x18] sm:$0xff]
        %v676 = vld [vmem:[#allocation11] sm:$0x1]
        %v678 = vlaneseq
        %v679 = vshrl.u32 %v678, 7
        %v680 = vsub.s32 0, %v679
        %v681 = vrot.slane %v676, %v680
        %v684 = vsel %vm514, %v502, 0
        %686 = vmatprep.subr.mxu0 0.0
        %687 = vmatpush1.msra.mxu0 %v672
        %688 = vmatprep.subr.mxu0 0.0
        %689 = vmatpush1.msra.mxu0 %v673
        %690 = vmatprep.subr.mxu0 0.0
        %691 = vmatpush1.msra.mxu0 %v674
        %692 = vmatprep.subr.mxu0 0.0
        %693 = vmatpush1.msra.mxu0 %v675
        %694 = vmatprep.subr.mxu0 0.0
        %695 = vmatpush1.msra.mxu0 0.0
        %696 = vmatprep.subr.mxu0 0.0
        %697 = vmatpush1.msra.mxu0 0.0
        %698 = vmatprep.subr.mxu0 0.0
        %699 = vmatpush1.msra.mxu0 0.0
        %700 = vmatprep.subr.mxu0 0.0
        %701 = vmatpush1.msra.mxu0 0.0
        %702 = vmatprep.subr.mxu0 0.0
        %703 = vmatpush1.msra.mxu0 0.0
        %704 = vmatprep.subr.mxu0 0.0
        %705 = vmatpush1.msra.mxu0 0.0
        %706 = vmatprep.subr.mxu0 0.0
        %707 = vmatpush1.msra.mxu0 0.0
        %708 = vmatprep.subr.mxu0 0.0
        %709 = vmatpush1.msra.mxu0 0.0
        %710 = vmatprep.subr.mxu0 0.0
        %711 = vmatpush1.msra.mxu0 0.0
        %712 = vmatprep.subr.mxu0 0.0
        %713 = vmatpush1.msra.mxu0 0.0
        %714 = vmatprep.subr.mxu0 0.0
        %715 = vmatpush1.msra.mxu0 0.0
        %716 = vmatprep.subr.mxu0 0.0
        %717 = vmatpush1.msra.mxu0 0.0
        %718 = vmatprep.subr.mxu0 0.0
        %719 = vmatpush1.msra.mxu0 0.0
        %720 = vmatprep.subr.mxu0 0.0
        %721 = vmatpush1.msra.mxu0 0.0
        %722 = vmatprep.subr.mxu0 0.0
        %723 = vmatpush1.msra.mxu0 0.0
        %724 = vmatprep.subr.mxu0 0.0
        %725 = vmatpush1.msra.mxu0 0.0
        %726 = vmatprep.subr.mxu0 0.0
        %727 = vmatpush1.msra.mxu0 0.0
        %728 = vmatprep.subr.mxu0 0.0
        %729 = vmatpush1.msra.mxu0 0.0
        %730 = vmatprep.subr.mxu0 0.0
        %731 = vmatpush1.msra.mxu0 0.0
        %732 = vmatprep.subr.mxu0 0.0
        %733 = vmatpush1.msra.mxu0 0.0
        %734 = vmatprep.subr.mxu0 0.0
        %735 = vmatpush1.msra.mxu0 0.0
        %736 = vmatprep.subr.mxu0 0.0
        %737 = vmatpush1.msra.mxu0 0.0
        %738 = vmatprep.subr.mxu0 0.0
        %739 = vmatpush1.msra.mxu0 0.0
        %740 = vmatprep.subr.mxu0 0.0
        %741 = vmatpush1.msra.mxu0 0.0
        %742 = vmatprep.subr.mxu0 0.0
        %743 = vmatpush1.msra.mxu0 0.0
        %744 = vmatprep.subr.mxu0 0.0
        %745 = vmatpush1.msra.mxu0 0.0
        %746 = vmatprep.subr.mxu0 0.0
        %747 = vmatpush1.msra.mxu0 0.0
        %748 = vmatprep.subr.mxu0 0.0
        %749 = vmatpush1.msra.mxu0 0.0
        %750 = vmatprep.mubr.f32.mxu0 0.0
        %751 = vmatmul.mubr.f32.gmra.mrb[0].mxu0 %v684
        %v752 = vpop.f32.mrb[0].mxu0
        %v753 = vadd.f32 %v681, %v752
        %v754 = vpop.f32.mrb[0].mxu0
        %755 = vdwg.mxu0
        %vm756 = vcmask 64512
        %v758 = vsel %vm756, %v585, 0
        %v761 = vsel %vm756, %v669, 0
        %763 = vmatprep.subr.mxu0 0.0
        %764 = vmatpush1.xpose.msra.mxu0 %v761
        %765 = vmatprep.subr.mxu0 0.0
        %766 = vmatpush1.xpose.msra.mxu0 0.0
        %767 = vmatprep.subr.mxu0 0.0
        %768 = vmatpush1.xpose.msra.mxu0 0.0
        %769 = vmatprep.subr.mxu0 0.0
        %770 = vmatpush1.xpose.msra.mxu0 0.0
        %771 = vmatprep.subr.mxu0 0.0
        %772 = vmatpush1.xpose.msra.mxu0 0.0
        %773 = vmatprep.subr.mxu0 0.0
        %774 = vmatpush1.xpose.msra.mxu0 0.0
        %775 = vmatprep.subr.mxu0 0.0
        %776 = vmatpush1.xpose.msra.mxu0 0.0
        %777 = vmatprep.subr.mxu0 0.0
        %778 = vmatpush1.xpose.msra.mxu0 0.0
        %779 = vmatprep.subr.mxu0 0.0
        %780 = vmatpush1.xpose.msra.mxu0 0.0
        %781 = vmatprep.subr.mxu0 0.0
        %782 = vmatpush1.xpose.msra.mxu0 0.0
        %783 = vmatprep.subr.mxu0 0.0
        %784 = vmatpush1.xpose.msra.mxu0 0.0
        %785 = vmatprep.subr.mxu0 0.0
        %786 = vmatpush1.xpose.msra.mxu0 0.0
        %787 = vmatprep.subr.mxu0 0.0
        %788 = vmatpush1.xpose.msra.mxu0 0.0
        %789 = vmatprep.subr.mxu0 0.0
        %790 = vmatpush1.xpose.msra.mxu0 0.0
        %791 = vmatprep.subr.mxu0 0.0
        %792 = vmatpush1.xpose.msra.mxu0 0.0
        %793 = vmatprep.subr.mxu0 0.0
        %794 = vmatpush1.xpose.msra.mxu0 0.0
        %795 = vmatprep.subr.mxu0 0.0
        %796 = vmatpush1.xpose.msra.mxu0 0.0
        %797 = vmatprep.subr.mxu0 0.0
        %798 = vmatpush1.xpose.msra.mxu0 0.0
        %799 = vmatprep.subr.mxu0 0.0
        %800 = vmatpush1.xpose.msra.mxu0 0.0
        %801 = vmatprep.subr.mxu0 0.0
        %802 = vmatpush1.xpose.msra.mxu0 0.0
        %803 = vmatprep.subr.mxu0 0.0
        %804 = vmatpush1.xpose.msra.mxu0 0.0
        %805 = vmatprep.subr.mxu0 0.0
        %806 = vmatpush1.xpose.msra.mxu0 0.0
        %807 = vmatprep.subr.mxu0 0.0
        %808 = vmatpush1.xpose.msra.mxu0 0.0
        %809 = vmatprep.subr.mxu0 0.0
        %810 = vmatpush1.xpose.msra.mxu0 0.0
        %811 = vmatprep.subr.mxu0 0.0
        %812 = vmatpush1.xpose.msra.mxu0 0.0
        %813 = vmatprep.subr.mxu0 0.0
        %814 = vmatpush1.xpose.msra.mxu0 0.0
        %815 = vmatprep.subr.mxu0 0.0
        %816 = vmatpush1.xpose.msra.mxu0 0.0
        %817 = vmatprep.subr.mxu0 0.0
        %818 = vmatpush1.xpose.msra.mxu0 0.0
        %819 = vmatprep.subr.mxu0 0.0
        %820 = vmatpush1.xpose.msra.mxu0 0.0
        %821 = vmatprep.subr.mxu0 0.0
        %822 = vmatpush1.xpose.msra.mxu0 0.0
        %823 = vmatprep.subr.mxu0 0.0
        %824 = vmatpush1.xpose.msra.mxu0 0.0
        %825 = vmatprep.subr.mxu0 0.0
        %826 = vmatpush1.xpose.msra.mxu0 0.0
        %827 = vmatprep.mubr.f32.mxu0 0.0
        %828 = vmatmul.mubr.f32.gmra.mrb[0].mxu0 %v758
        %v829 = vpop.f32.mrb[0].mxu0
        %v830 = vadd.f32 0.0, %v829
        %v831 = vpop.f32.mrb[0].mxu0
        %832 = vdwg.mxu0
        %v833 = vmul.f32 %v830, 0.35355338
        %v834 = vsel %vm756, %v833, -inf
        %835 = vmax.xlane.f32.xlu0 %v834
        %v836 = vpop.xlane.xlu0 %835
        %v837 = vsub.f32 %v833, %v836
        %v838 = vmul.f32 %v837, 1.442695
        %v839 = vpow.pop %v838
        %v840 = vsel %vm756, %v839, 0.0
        %841 = vadd.xlane.f32.xlu0 %v840
        %v842 = vpop.xlane.xlu0 %841
        %v843 = vrcp.pop %v842
        %v844 = vmul.f32 %v839, %v843
        %v846 = vsel %vm756, %v844, 0
        %848 = vmatprep.subr.mxu0 0.0
        %849 = vmatpush1.msra.mxu0 %v753
        %850 = vmatprep.subr.mxu0 0.0
        %851 = vmatpush1.msra.mxu0 0.0
        %852 = vmatprep.subr.mxu0 0.0
        %853 = vmatpush1.msra.mxu0 0.0
        %854 = vmatprep.subr.mxu0 0.0
        %855 = vmatpush1.msra.mxu0 0.0
        %856 = vmatprep.subr.mxu0 0.0
        %857 = vmatpush1.msra.mxu0 0.0
        %858 = vmatprep.subr.mxu0 0.0
        %859 = vmatpush1.msra.mxu0 0.0
        %860 = vmatprep.subr.mxu0 0.0
        %861 = vmatpush1.msra.mxu0 0.0
        %862 = vmatprep.subr.mxu0 0.0
        %863 = vmatpush1.msra.mxu0 0.0
        %864 = vmatprep.subr.mxu0 0.0
        %865 = vmatpush1.msra.mxu0 0.0
        %866 = vmatprep.subr.mxu0 0.0
        %867 = vmatpush1.msra.mxu0 0.0
        %868 = vmatprep.subr.mxu0 0.0
        %869 = vmatpush1.msra.mxu0 0.0
        %870 = vmatprep.subr.mxu0 0.0
        %871 = vmatpush1.msra.mxu0 0.0
        %872 = vmatprep.subr.mxu0 0.0
        %873 = vmatpush1.msra.mxu0 0.0
        %874 = vmatprep.subr.mxu0 0.0
        %875 = vmatpush1.msra.mxu0 0.0
        %876 = vmatprep.subr.mxu0 0.0
        %877 = vmatpush1.msra.mxu0 0.0
        %878 = vmatprep.subr.mxu0 0.0
        %879 = vmatpush1.msra.mxu0 0.0
        %880 = vmatprep.subr.mxu0 0.0
        %881 = vmatpush1.msra.mxu0 0.0
        %882 = vmatprep.subr.mxu0 0.0
        %883 = vmatpush1.msra.mxu0 0.0
        %884 = vmatprep.subr.mxu0 0.0
        %885 = vmatpush1.msra.mxu0 0.0
        %886 = vmatprep.subr.mxu0 0.0
        %887 = vmatpush1.msra.mxu0 0.0
        %888 = vmatprep.subr.mxu0 0.0
        %889 = vmatpush1.msra.mxu0 0.0
        %890 = vmatprep.subr.mxu0 0.0
        %891 = vmatpush1.msra.mxu0 0.0
        %892 = vmatprep.subr.mxu0 0.0
        %893 = vmatpush1.msra.mxu0 0.0
        %894 = vmatprep.subr.mxu0 0.0
        %895 = vmatpush1.msra.mxu0 0.0
        %896 = vmatprep.subr.mxu0 0.0
        %897 = vmatpush1.msra.mxu0 0.0
        %898 = vmatprep.subr.mxu0 0.0
        %899 = vmatpush1.msra.mxu0 0.0
        %900 = vmatprep.subr.mxu0 0.0
        %901 = vmatpush1.msra.mxu0 0.0
        %902 = vmatprep.subr.mxu0 0.0
        %903 = vmatpush1.msra.mxu0 0.0
        %904 = vmatprep.subr.mxu0 0.0
        %905 = vmatpush1.msra.mxu0 0.0
        %906 = vmatprep.subr.mxu0 0.0
        %907 = vmatpush1.msra.mxu0 0.0
        %908 = vmatprep.subr.mxu0 0.0
        %909 = vmatpush1.msra.mxu0 0.0
        %910 = vmatprep.subr.mxu0 0.0
        %911 = vmatpush1.msra.mxu0 0.0
        %912 = vmatprep.mubr.f32.mxu0 0.0
        %913 = vmatmul.mubr.f32.gmra.mrb[0].mxu0 %v846
        %v914 = vpop.f32.mrb[0].mxu0
        %v915 = vadd.f32 0.0, %v914
        %v916 = vpop.f32.mrb[0].mxu0
        %917 = vdwg.mxu0
        %918 = vst.msk [vmem:[#allocation2] sm:$0xff] %vm756, %v915
        %919 = vrot.lane.b32.xlu0 %v585, 120
        %v920 = vpop.permute.xlu0 %919
        %921 = vrot.lane.b32.xlu0 %v669, 120
        %v922 = vpop.permute.xlu0 %921
        %v923 = vsel %vm756, %v920, 0
        %v925 = vsel %vm756, %v922, 0
        %927 = vmatprep.subr.mxu0 0.0
        %928 = vmatpush1.xpose.msra.mxu0 %v925
        %929 = vmatprep.subr.mxu0 0.0
        %930 = vmatpush1.xpose.msra.mxu0 0.0
        %931 = vmatprep.subr.mxu0 0.0
        %932 = vmatpush1.xpose.msra.mxu0 0.0
        %933 = vmatprep.subr.mxu0 0.0
        %934 = vmatpush1.xpose.msra.mxu0 0.0
        %935 = vmatprep.subr.mxu0 0.0
        %936 = vmatpush1.xpose.msra.mxu0 0.0
        %937 = vmatprep.subr.mxu0 0.0
        %938 = vmatpush1.xpose.msra.mxu0 0.0
        %939 = vmatprep.subr.mxu0 0.0
        %940 = vmatpush1.xpose.msra.mxu0 0.0
        %941 = vmatprep.subr.mxu0 0.0
        %942 = vmatpush1.xpose.msra.mxu0 0.0
        %943 = vmatprep.subr.mxu0 0.0
        %944 = vmatpush1.xpose.msra.mxu0 0.0
        %945 = vmatprep.subr.mxu0 0.0
        %946 = vmatpush1.xpose.msra.mxu0 0.0
        %947 = vmatprep.subr.mxu0 0.0
        %948 = vmatpush1.xpose.msra.mxu0 0.0
        %949 = vmatprep.subr.mxu0 0.0
        %950 = vmatpush1.xpose.msra.mxu0 0.0
        %951 = vmatprep.subr.mxu0 0.0
        %952 = vmatpush1.xpose.msra.mxu0 0.0
        %953 = vmatprep.subr.mxu0 0.0
        %954 = vmatpush1.xpose.msra.mxu0 0.0
        %955 = vmatprep.subr.mxu0 0.0
        %956 = vmatpush1.xpose.msra.mxu0 0.0
        %957 = vmatprep.subr.mxu0 0.0
        %958 = vmatpush1.xpose.msra.mxu0 0.0
        %959 = vmatprep.subr.mxu0 0.0
        %960 = vmatpush1.xpose.msra.mxu0 0.0
        %961 = vmatprep.subr.mxu0 0.0
        %962 = vmatpush1.xpose.msra.mxu0 0.0
        %963 = vmatprep.subr.mxu0 0.0
        %964 = vmatpush1.xpose.msra.mxu0 0.0
        %965 = vmatprep.subr.mxu0 0.0
        %966 = vmatpush1.xpose.msra.mxu0 0.0
        %967 = vmatprep.subr.mxu0 0.0
        %968 = vmatpush1.xpose.msra.mxu0 0.0
        %969 = vmatprep.subr.mxu0 0.0
        %970 = vmatpush1.xpose.msra.mxu0 0.0
        %971 = vmatprep.subr.mxu0 0.0
        %972 = vmatpush1.xpose.msra.mxu0 0.0
        %973 = vmatprep.subr.mxu0 0.0
        %974 = vmatpush1.xpose.msra.mxu0 0.0
        %975 = vmatprep.subr.mxu0 0.0
        %976 = vmatpush1.xpose.msra.mxu0 0.0
        %977 = vmatprep.subr.mxu0 0.0
        %978 = vmatpush1.xpose.msra.mxu0 0.0
        %979 = vmatprep.subr.mxu0 0.0
        %980 = vmatpush1.xpose.msra.mxu0 0.0
        %981 = vmatprep.subr.mxu0 0.0
        %982 = vmatpush1.xpose.msra.mxu0 0.0
        %983 = vmatprep.subr.mxu0 0.0
        %984 = vmatpush1.xpose.msra.mxu0 0.0
        %985 = vmatprep.subr.mxu0 0.0
        %986 = vmatpush1.xpose.msra.mxu0 0.0
        %987 = vmatprep.subr.mxu0 0.0
        %988 = vmatpush1.xpose.msra.mxu0 0.0
        %989 = vmatprep.subr.mxu0 0.0
        %990 = vmatpush1.xpose.msra.mxu0 0.0
        %991 = vmatprep.mubr.f32.mxu0 0.0
        %992 = vmatmul.mubr.f32.gmra.mrb[0].mxu0 %v923
        %v993 = vpop.f32.mrb[0].mxu0
        %v994 = vadd.f32 0.0, %v993
        %v995 = vpop.f32.mrb[0].mxu0
        %996 = vdwg.mxu0
        %v997 = vmul.f32 %v994, 0.35355338
        %v998 = vsel %vm756, %v997, -inf
        %999 = vmax.xlane.f32.xlu0 %v998
        %v1000 = vpop.xlane.xlu0 %999
        %v1001 = vsub.f32 %v997, %v1000
        %v1002 = vmul.f32 %v1001, 1.442695
        %v1003 = vpow.pop %v1002
        %v1004 = vsel %vm756, %v1003, 0.0
        %1005 = vadd.xlane.f32.xlu0 %v1004
        %v1006 = vpop.xlane.xlu0 %1005
        %v1007 = vrcp.pop %v1006
        %v1008 = vmul.f32 %v1003, %v1007
        %1010 = vrot.lane.b32.xlu0 %v753, 120
        %v1011 = vpop.permute.xlu0 %1010
        %v1014 = vsel %vm756, %v1008, 0
        %1016 = vmatprep.subr.mxu0 0.0
        %1017 = vmatpush1.msra.mxu0 %v1011
        %1018 = vmatprep.subr.mxu0 0.0
        %1019 = vmatpush1.msra.mxu0 0.0
        %1020 = vmatprep.subr.mxu0 0.0
        %1021 = vmatpush1.msra.mxu0 0.0
        %1022 = vmatprep.subr.mxu0 0.0
        %1023 = vmatpush1.msra.mxu0 0.0
        %1024 = vmatprep.subr.mxu0 0.0
        %1025 = vmatpush1.msra.mxu0 0.0
        %1026 = vmatprep.subr.mxu0 0.0
        %1027 = vmatpush1.msra.mxu0 0.0
        %1028 = vmatprep.subr.mxu0 0.0
        %1029 = vmatpush1.msra.mxu0 0.0
        %1030 = vmatprep.subr.mxu0 0.0
        %1031 = vmatpush1.msra.mxu0 0.0
        %1032 = vmatprep.subr.mxu0 0.0
        %1033 = vmatpush1.msra.mxu0 0.0
        %1034 = vmatprep.subr.mxu0 0.0
        %1035 = vmatpush1.msra.mxu0 0.0
        %1036 = vmatprep.subr.mxu0 0.0
        %1037 = vmatpush1.msra.mxu0 0.0
        %1038 = vmatprep.subr.mxu0 0.0
        %1039 = vmatpush1.msra.mxu0 0.0
        %1040 = vmatprep.subr.mxu0 0.0
        %1041 = vmatpush1.msra.mxu0 0.0
        %1042 = vmatprep.subr.mxu0 0.0
        %1043 = vmatpush1.msra.mxu0 0.0
        %1044 = vmatprep.subr.mxu0 0.0
        %1045 = vmatpush1.msra.mxu0 0.0
        %1046 = vmatprep.subr.mxu0 0.0
        %1047 = vmatpush1.msra.mxu0 0.0
        %1048 = vmatprep.subr.mxu0 0.0
        %1049 = vmatpush1.msra.mxu0 0.0
        %1050 = vmatprep.subr.mxu0 0.0
        %1051 = vmatpush1.msra.mxu0 0.0
        %1052 = vmatprep.subr.mxu0 0.0
        %1053 = vmatpush1.msra.mxu0 0.0
        %1054 = vmatprep.subr.mxu0 0.0
        %1055 = vmatpush1.msra.mxu0 0.0
        %1056 = vmatprep.subr.mxu0 0.0
        %1057 = vmatpush1.msra.mxu0 0.0
        %1058 = vmatprep.subr.mxu0 0.0
        %1059 = vmatpush1.msra.mxu0 0.0
        %1060 = vmatprep.subr.mxu0 0.0
        %1061 = vmatpush1.msra.mxu0 0.0
        %1062 = vmatprep.subr.mxu0 0.0
        %1063 = vmatpush1.msra.mxu0 0.0
        %1064 = vmatprep.subr.mxu0 0.0
        %1065 = vmatpush1.msra.mxu0 0.0
        %1066 = vmatprep.subr.mxu0 0.0
        %1067 = vmatpush1.msra.mxu0 0.0
        %1068 = vmatprep.subr.mxu0 0.0
        %1069 = vmatpush1.msra.mxu0 0.0
        %1070 = vmatprep.subr.mxu0 0.0
        %1071 = vmatpush1.msra.mxu0 0.0
        %1072 = vmatprep.subr.mxu0 0.0
        %1073 = vmatpush1.msra.mxu0 0.0
        %1074 = vmatprep.subr.mxu0 0.0
        %1075 = vmatpush1.msra.mxu0 0.0
        %1076 = vmatprep.subr.mxu0 0.0
        %1077 = vmatpush1.msra.mxu0 0.0
        %1078 = vmatprep.subr.mxu0 0.0
        %1079 = vmatpush1.msra.mxu0 0.0
        %1080 = vmatprep.mubr.f32.mxu0 0.0
        %1081 = vmatmul.mubr.f32.gmra.mrb[0].mxu0 %v1014
        %v1082 = vpop.f32.mrb[0].mxu0
        %v1083 = vadd.f32 0.0, %v1082
        %v1084 = vpop.f32.mrb[0].mxu0
        %1085 = vdwg.mxu0
        %1086 = vst.msk [vmem:[#allocation2 + $0x8] sm:$0xff] %vm756, %v1083
        %1087 = vrot.lane.b32.xlu0 %v585, 112
        %v1088 = vpop.permute.xlu0 %1087
        %1089 = vrot.lane.b32.xlu0 %v669, 112
        %v1090 = vpop.permute.xlu0 %1089
        %v1091 = vsel %vm756, %v1088, 0
        %v1093 = vsel %vm756, %v1090, 0
        %1095 = vmatprep.subr.mxu0 0.0
        %1096 = vmatpush1.xpose.msra.mxu0 %v1093
        %1097 = vmatprep.subr.mxu0 0.0
        %1098 = vmatpush1.xpose.msra.mxu0 0.0
        %1099 = vmatprep.subr.mxu0 0.0
        %1100 = vmatpush1.xpose.msra.mxu0 0.0
        %1101 = vmatprep.subr.mxu0 0.0
        %1102 = vmatpush1.xpose.msra.mxu0 0.0
        %1103 = vmatprep.subr.mxu0 0.0
        %1104 = vmatpush1.xpose.msra.mxu0 0.0
        %1105 = vmatprep.subr.mxu0 0.0
        %1106 = vmatpush1.xpose.msra.mxu0 0.0
        %1107 = vmatprep.subr.mxu0 0.0
        %1108 = vmatpush1.xpose.msra.mxu0 0.0
        %1109 = vmatprep.subr.mxu0 0.0
        %1110 = vmatpush1.xpose.msra.mxu0 0.0
        %1111 = vmatprep.subr.mxu0 0.0
        %1112 = vmatpush1.xpose.msra.mxu0 0.0
        %1113 = vmatprep.subr.mxu0 0.0
        %1114 = vmatpush1.xpose.msra.mxu0 0.0
        %1115 = vmatprep.subr.mxu0 0.0
        %1116 = vmatpush1.xpose.msra.mxu0 0.0
        %1117 = vmatprep.subr.mxu0 0.0
        %1118 = vmatpush1.xpose.msra.mxu0 0.0
        %1119 = vmatprep.subr.mxu0 0.0
        %1120 = vmatpush1.xpose.msra.mxu0 0.0
        %1121 = vmatprep.subr.mxu0 0.0
        %1122 = vmatpush1.xpose.msra.mxu0 0.0
        %1123 = vmatprep.subr.mxu0 0.0
        %1124 = vmatpush1.xpose.msra.mxu0 0.0
        %1125 = vmatprep.subr.mxu0 0.0
        %1126 = vmatpush1.xpose.msra.mxu0 0.0
        %1127 = vmatprep.subr.mxu0 0.0
        %1128 = vmatpush1.xpose.msra.mxu0 0.0
        %1129 = vmatprep.subr.mxu0 0.0
        %1130 = vmatpush1.xpose.msra.mxu0 0.0
        %1131 = vmatprep.subr.mxu0 0.0
        %1132 = vmatpush1.xpose.msra.mxu0 0.0
        %1133 = vmatprep.subr.mxu0 0.0
        %1134 = vmatpush1.xpose.msra.mxu0 0.0
        %1135 = vmatprep.subr.mxu0 0.0
        %1136 = vmatpush1.xpose.msra.mxu0 0.0
        %1137 = vmatprep.subr.mxu0 0.0
        %1138 = vmatpush1.xpose.msra.mxu0 0.0
        %1139 = vmatprep.subr.mxu0 0.0
        %1140 = vmatpush1.xpose.msra.mxu0 0.0
        %1141 = vmatprep.subr.mxu0 0.0
        %1142 = vmatpush1.xpose.msra.mxu0 0.0
        %1143 = vmatprep.subr.mxu0 0.0
        %1144 = vmatpush1.xpose.msra.mxu0 0.0
        %1145 = vmatprep.subr.mxu0 0.0
        %1146 = vmatpush1.xpose.msra.mxu0 0.0
        %1147 = vmatprep.subr.mxu0 0.0
        %1148 = vmatpush1.xpose.msra.mxu0 0.0
        %1149 = vmatprep.subr.mxu0 0.0
        %1150 = vmatpush1.xpose.msra.mxu0 0.0
        %1151 = vmatprep.subr.mxu0 0.0
        %1152 = vmatpush1.xpose.msra.mxu0 0.0
        %1153 = vmatprep.subr.mxu0 0.0
        %1154 = vmatpush1.xpose.msra.mxu0 0.0
        %1155 = vmatprep.subr.mxu0 0.0
        %1156 = vmatpush1.xpose.msra.mxu0 0.0
        %1157 = vmatprep.subr.mxu0 0.0
        %1158 = vmatpush1.xpose.msra.mxu0 0.0
        %1159 = vmatprep.mubr.f32.mxu0 0.0
        %1160 = vmatmul.mubr.f32.gmra.mrb[0].mxu0 %v1091
        %v1161 = vpop.f32.mrb[0].mxu0
        %v1162 = vadd.f32 0.0, %v1161
        %v1163 = vpop.f32.mrb[0].mxu0
        %1164 = vdwg.mxu0
        %v1165 = vmul.f32 %v1162, 0.35355338
        %v1166 = vsel %vm756, %v1165, -inf
        %1167 = vmax.xlane.f32.xlu0 %v1166
        %v1168 = vpop.xlane.xlu0 %1167
        %v1169 = vsub.f32 %v1165, %v1168
        %v1170 = vmul.f32 %v1169, 1.442695
        %v1171 = vpow.pop %v1170
        %v1172 = vsel %vm756, %v1171, 0.0
        %1173 = vadd.xlane.f32.xlu0 %v1172
        %v1174 = vpop.xlane.xlu0 %1173
        %v1175 = vrcp.pop %v1174
        %v1176 = vmul.f32 %v1171, %v1175
        %1177 = vrot.lane.b32.xlu0 %v753, 112
        %v1178 = vpop.permute.xlu0 %1177
        %v1181 = vsel %vm756, %v1176, 0
        %1183 = vmatprep.subr.mxu0 0.0
        %1184 = vmatpush1.msra.mxu0 %v1178
        %1185 = vmatprep.subr.mxu0 0.0
        %1186 = vmatpush1.msra.mxu0 0.0
        %1187 = vmatprep.subr.mxu0 0.0
        %1188 = vmatpush1.msra.mxu0 0.0
        %1189 = vmatprep.subr.mxu0 0.0
        %1190 = vmatpush1.msra.mxu0 0.0
        %1191 = vmatprep.subr.mxu0 0.0
        %1192 = vmatpush1.msra.mxu0 0.0
        %1193 = vmatprep.subr.mxu0 0.0
        %1194 = vmatpush1.msra.mxu0 0.0
        %1195 = vmatprep.subr.mxu0 0.0
        %1196 = vmatpush1.msra.mxu0 0.0
        %1197 = vmatprep.subr.mxu0 0.0
        %1198 = vmatpush1.msra.mxu0 0.0
        %1199 = vmatprep.subr.mxu0 0.0
        %1200 = vmatpush1.msra.mxu0 0.0
        %1201 = vmatprep.subr.mxu0 0.0
        %1202 = vmatpush1.msra.mxu0 0.0
        %1203 = vmatprep.subr.mxu0 0.0
        %1204 = vmatpush1.msra.mxu0 0.0
        %1205 = vmatprep.subr.mxu0 0.0
        %1206 = vmatpush1.msra.mxu0 0.0
        %1207 = vmatprep.subr.mxu0 0.0
        %1208 = vmatpush1.msra.mxu0 0.0
        %1209 = vmatprep.subr.mxu0 0.0
        %1210 = vmatpush1.msra.mxu0 0.0
        %1211 = vmatprep.subr.mxu0 0.0
        %1212 = vmatpush1.msra.mxu0 0.0
        %1213 = vmatprep.subr.mxu0 0.0
        %1214 = vmatpush1.msra.mxu0 0.0
        %1215 = vmatprep.subr.mxu0 0.0
        %1216 = vmatpush1.msra.mxu0 0.0
        %1217 = vmatprep.subr.mxu0 0.0
        %1218 = vmatpush1.msra.mxu0 0.0
        %1219 = vmatprep.subr.mxu0 0.0
        %1220 = vmatpush1.msra.mxu0 0.0
        %1221 = vmatprep.subr.mxu0 0.0
        %1222 = vmatpush1.msra.mxu0 0.0
        %1223 = vmatprep.subr.mxu0 0.0
        %1224 = vmatpush1.msra.mxu0 0.0
        %1225 = vmatprep.subr.mxu0 0.0
        %1226 = vmatpush1.msra.mxu0 0.0
        %1227 = vmatprep.subr.mxu0 0.0
        %1228 = vmatpush1.msra.mxu0 0.0
        %1229 = vmatprep.subr.mxu0 0.0
        %1230 = vmatpush1.msra.mxu0 0.0
        %1231 = vmatprep.subr.mxu0 0.0
        %1232 = vmatpush1.msra.mxu0 0.0
        %1233 = vmatprep.subr.mxu0 0.0
        %1234 = vmatpush1.msra.mxu0 0.0
        %1235 = vmatprep.subr.mxu0 0.0
        %1236 = vmatpush1.msra.mxu0 0.0
        %1237 = vmatprep.subr.mxu0 0.0
        %1238 = vmatpush1.msra.mxu0 0.0
        %1239 = vmatprep.subr.mxu0 0.0
        %1240 = vmatpush1.msra.mxu0 0.0
        %1241 = vmatprep.subr.mxu0 0.0
        %1242 = vmatpush1.msra.mxu0 0.0
        %1243 = vmatprep.subr.mxu0 0.0
        %1244 = vmatpush1.msra.mxu0 0.0
        %1245 = vmatprep.subr.mxu0 0.0
        %1246 = vmatpush1.msra.mxu0 0.0
        %1247 = vmatprep.mubr.f32.mxu0 0.0
        %1248 = vmatmul.mubr.f32.gmra.mrb[0].mxu0 %v1181
        %v1249 = vpop.f32.mrb[0].mxu0
        %v1250 = vadd.f32 0.0, %v1249
        %v1251 = vpop.f32.mrb[0].mxu0
        %1252 = vdwg.mxu0
        %1253 = vst.msk [vmem:[#allocation2 + $0x10] sm:$0xff] %vm756, %v1250
        %1254 = vrot.lane.b32.xlu0 %v585, 104
        %v1255 = vpop.permute.xlu0 %1254
        %1256 = vrot.lane.b32.xlu0 %v669, 104
        %v1257 = vpop.permute.xlu0 %1256
        %v1258 = vsel %vm756, %v1255, 0
        %v1260 = vsel %vm756, %v1257, 0
        %1262 = vmatprep.subr.mxu0 0.0
        %1263 = vmatpush1.xpose.msra.mxu0 %v1260
        %1264 = vmatprep.subr.mxu0 0.0
        %1265 = vmatpush1.xpose.msra.mxu0 0.0
        %1266 = vmatprep.subr.mxu0 0.0
        %1267 = vmatpush1.xpose.msra.mxu0 0.0
        %1268 = vmatprep.subr.mxu0 0.0
        %1269 = vmatpush1.xpose.msra.mxu0 0.0
        %1270 = vmatprep.subr.mxu0 0.0
        %1271 = vmatpush1.xpose.msra.mxu0 0.0
        %1272 = vmatprep.subr.mxu0 0.0
        %1273 = vmatpush1.xpose.msra.mxu0 0.0
        %1274 = vmatprep.subr.mxu0 0.0
        %1275 = vmatpush1.xpose.msra.mxu0 0.0
        %1276 = vmatprep.subr.mxu0 0.0
        %1277 = vmatpush1.xpose.msra.mxu0 0.0
        %1278 = vmatprep.subr.mxu0 0.0
        %1279 = vmatpush1.xpose.msra.mxu0 0.0
        %1280 = vmatprep.subr.mxu0 0.0
        %1281 = vmatpush1.xpose.msra.mxu0 0.0
        %1282 = vmatprep.subr.mxu0 0.0
        %1283 = vmatpush1.xpose.msra.mxu0 0.0
        %1284 = vmatprep.subr.mxu0 0.0
        %1285 = vmatpush1.xpose.msra.mxu0 0.0
        %1286 = vmatprep.subr.mxu0 0.0
        %1287 = vmatpush1.xpose.msra.mxu0 0.0
        %1288 = vmatprep.subr.mxu0 0.0
        %1289 = vmatpush1.xpose.msra.mxu0 0.0
        %1290 = vmatprep.subr.mxu0 0.0
        %1291 = vmatpush1.xpose.msra.mxu0 0.0
        %1292 = vmatprep.subr.mxu0 0.0
        %1293 = vmatpush1.xpose.msra.mxu0 0.0
        %1294 = vmatprep.subr.mxu0 0.0
        %1295 = vmatpush1.xpose.msra.mxu0 0.0
        %1296 = vmatprep.subr.mxu0 0.0
        %1297 = vmatpush1.xpose.msra.mxu0 0.0
        %1298 = vmatprep.subr.mxu0 0.0
        %1299 = vmatpush1.xpose.msra.mxu0 0.0
        %1300 = vmatprep.subr.mxu0 0.0
        %1301 = vmatpush1.xpose.msra.mxu0 0.0
        %1302 = vmatprep.subr.mxu0 0.0
        %1303 = vmatpush1.xpose.msra.mxu0 0.0
        %1304 = vmatprep.subr.mxu0 0.0
        %1305 = vmatpush1.xpose.msra.mxu0 0.0
        %1306 = vmatprep.subr.mxu0 0.0
        %1307 = vmatpush1.xpose.msra.mxu0 0.0
        %1308 = vmatprep.subr.mxu0 0.0
        %1309 = vmatpush1.xpose.msra.mxu0 0.0
        %1310 = vmatprep.subr.mxu0 0.0
        %1311 = vmatpush1.xpose.msra.mxu0 0.0
        %1312 = vmatprep.subr.mxu0 0.0
        %1313 = vmatpush1.xpose.msra.mxu0 0.0
        %1314 = vmatprep.subr.mxu0 0.0
        %1315 = vmatpush1.xpose.msra.mxu0 0.0
        %1316 = vmatprep.subr.mxu0 0.0
        %1317 = vmatpush1.xpose.msra.mxu0 0.0
        %1318 = vmatprep.subr.mxu0 0.0
        %1319 = vmatpush1.xpose.msra.mxu0 0.0
        %1320 = vmatprep.subr.mxu0 0.0
        %1321 = vmatpush1.xpose.msra.mxu0 0.0
        %1322 = vmatprep.subr.mxu0 0.0
        %1323 = vmatpush1.xpose.msra.mxu0 0.0
        %1324 = vmatprep.subr.mxu0 0.0
        %1325 = vmatpush1.xpose.msra.mxu0 0.0
        %1326 = vmatprep.mubr.f32.mxu0 0.0
        %1327 = vmatmul.mubr.f32.gmra.mrb[0].mxu0 %v1258
        %v1328 = vpop.f32.mrb[0].mxu0
        %v1329 = vadd.f32 0.0, %v1328
        %v1330 = vpop.f32.mrb[0].mxu0
        %1331 = vdwg.mxu0
        %v1332 = vmul.f32 %v1329, 0.35355338
        %v1333 = vsel %vm756, %v1332, -inf
        %1334 = vmax.xlane.f32.xlu0 %v1333
        %v1335 = vpop.xlane.xlu0 %1334
        %v1336 = vsub.f32 %v1332, %v1335
        %v1337 = vmul.f32 %v1336, 1.442695
        %v1338 = vpow.pop %v1337
        %v1339 = vsel %vm756, %v1338, 0.0
        %1340 = vadd.xlane.f32.xlu0 %v1339
        %v1341 = vpop.xlane.xlu0 %1340
        %v1342 = vrcp.pop %v1341
        %v1343 = vmul.f32 %v1338, %v1342
        %1344 = vrot.lane.b32.xlu0 %v753, 104
        %v1345 = vpop.permute.xlu0 %1344
        %v1348 = vsel %vm756, %v1343, 0
        %1350 = vmatprep.subr.mxu0 0.0
        %1351 = vmatpush1.msra.mxu0 %v1345
        %1352 = vmatprep.subr.mxu0 0.0
        %1353 = vmatpush1.msra.mxu0 0.0
        %1354 = vmatprep.subr.mxu0 0.0
        %1355 = vmatpush1.msra.mxu0 0.0
        %1356 = vmatprep.subr.mxu0 0.0
        %1357 = vmatpush1.msra.mxu0 0.0
        %1358 = vmatprep.subr.mxu0 0.0
        %1359 = vmatpush1.msra.mxu0 0.0
        %1360 = vmatprep.subr.mxu0 0.0
        %1361 = vmatpush1.msra.mxu0 0.0
        %1362 = vmatprep.subr.mxu0 0.0
        %1363 = vmatpush1.msra.mxu0 0.0
        %1364 = vmatprep.subr.mxu0 0.0
        %1365 = vmatpush1.msra.mxu0 0.0
        %1366 = vmatprep.subr.mxu0 0.0
        %1367 = vmatpush1.msra.mxu0 0.0
        %1368 = vmatprep.subr.mxu0 0.0
        %1369 = vmatpush1.msra.mxu0 0.0
        %1370 = vmatprep.subr.mxu0 0.0
        %1371 = vmatpush1.msra.mxu0 0.0
        %1372 = vmatprep.subr.mxu0 0.0
        %1373 = vmatpush1.msra.mxu0 0.0
        %1374 = vmatprep.subr.mxu0 0.0
        %1375 = vmatpush1.msra.mxu0 0.0
        %1376 = vmatprep.subr.mxu0 0.0
        %1377 = vmatpush1.msra.mxu0 0.0
        %1378 = vmatprep.subr.mxu0 0.0
        %1379 = vmatpush1.msra.mxu0 0.0
        %1380 = vmatprep.subr.mxu0 0.0
        %1381 = vmatpush1.msra.mxu0 0.0
        %1382 = vmatprep.subr.mxu0 0.0
        %1383 = vmatpush1.msra.mxu0 0.0
        %1384 = vmatprep.subr.mxu0 0.0
        %1385 = vmatpush1.msra.mxu0 0.0
        %1386 = vmatprep.subr.mxu0 0.0
        %1387 = vmatpush1.msra.mxu0 0.0
        %1388 = vmatprep.subr.mxu0 0.0
        %1389 = vmatpush1.msra.mxu0 0.0
        %1390 = vmatprep.subr.mxu0 0.0
        %1391 = vmatpush1.msra.mxu0 0.0
        %1392 = vmatprep.subr.mxu0 0.0
        %1393 = vmatpush1.msra.mxu0 0.0
        %1394 = vmatprep.subr.mxu0 0.0
        %1395 = vmatpush1.msra.mxu0 0.0
        %1396 = vmatprep.subr.mxu0 0.0
        %1397 = vmatpush1.msra.mxu0 0.0
        %1398 = vmatprep.subr.mxu0 0.0
        %1399 = vmatpush1.msra.mxu0 0.0
        %1400 = vmatprep.subr.mxu0 0.0
        %1401 = vmatpush1.msra.mxu0 0.0
        %1402 = vmatprep.subr.mxu0 0.0
        %1403 = vmatpush1.msra.mxu0 0.0
        %1404 = vmatprep.subr.mxu0 0.0
        %1405 = vmatpush1.msra.mxu0 0.0
        %1406 = vmatprep.subr.mxu0 0.0
        %1407 = vmatpush1.msra.mxu0 0.0
        %1408 = vmatprep.subr.mxu0 0.0
        %1409 = vmatpush1.msra.mxu0 0.0
        %1410 = vmatprep.subr.mxu0 0.0
        %1411 = vmatpush1.msra.mxu0 0.0
        %1412 = vmatprep.subr.mxu0 0.0
        %1413 = vmatpush1.msra.mxu0 0.0
        %1414 = vmatprep.mubr.f32.mxu0 0.0
        %1415 = vmatmul.mubr.f32.gmra.mrb[0].mxu0 %v1348
        %v1416 = vpop.f32.mrb[0].mxu0
        %v1417 = vadd.f32 0.0, %v1416
        %v1418 = vpop.f32.mrb[0].mxu0
        %1419 = vdwg.mxu0
        %1420 = vst.msk [vmem:[#allocation2 + $0x18] sm:$0xff] %vm756, %v1417
        %v1421 = vld [vmem:[#allocation2] sm:$0xff]
        %v1422 = vld [vmem:[#allocation2 + $0x8] sm:$0xff]
        %v1423 = vld [vmem:[#allocation2 + $0x10] sm:$0xff]
        %v1424 = vld [vmem:[#allocation2 + $0x18] sm:$0xff]
        %v1425 = vld [vmem:[%s9] sm:$0xff]
        %v1426 = vld [vmem:[%s9 + $0x8] sm:$0xff]
        %v1427 = vld [vmem:[%s9 + $0x10] sm:$0xff]
        %v1428 = vld [vmem:[%s9 + $0x18] sm:$0xff]
        %v1429 = vlaneseq
        %v1430 = vshrl.u32 %v1429, 7
        %v1431 = vlaneseq
        %v1432 = vand.u32 %v1431, 127
        %v1433 = vmul.u32 %v1430, 4
        %vm1434 = vcmp.eq.s32.totalorder %v1432, %v1433
        %v1435 = vsel %vm1434, 1.0, 0.0
        %v1437 = vsel %vm756, %v1421, 0
        %v1440 = vsel %vm756, %v1422, 0
        %v1443 = vsel %vm756, %v1423, 0
        %v1446 = vsel %vm756, %v1424, 0
        %1448 = vmatprep.subr.mxu0 0.0
        %1449 = vmatpush1.msra.mxu0 %v1425
        %1450 = vmatprep.subr.mxu0 0.0
        %1451 = vmatpush1.msra.mxu0 0.0
        %1452 = vmatprep.subr.mxu0 0.0
        %1453 = vmatpush1.msra.mxu0 0.0
        %1454 = vmatprep.subr.mxu0 0.0
        %1455 = vmatpush1.msra.mxu0 0.0
        %1456 = vmatprep.subr.mxu0 0.0
        %1457 = vmatpush1.msra.mxu0 0.0
        %1458 = vmatprep.subr.mxu0 0.0
        %1459 = vmatpush1.msra.mxu0 0.0
        %1460 = vmatprep.subr.mxu0 0.0
        %1461 = vmatpush1.msra.mxu0 0.0
        %1462 = vmatprep.subr.mxu0 0.0
        %1463 = vmatpush1.msra.mxu0 0.0
        %1464 = vmatprep.subr.mxu0 0.0
        %1465 = vmatpush1.msra.mxu0 0.0
        %1466 = vmatprep.subr.mxu0 0.0
        %1467 = vmatpush1.msra.mxu0 0.0
        %1468 = vmatprep.subr.mxu0 0.0
        %1469 = vmatpush1.msra.mxu0 0.0
        %1470 = vmatprep.subr.mxu0 0.0
        %1471 = vmatpush1.msra.mxu0 0.0
        %1472 = vmatprep.subr.mxu0 0.0
        %1473 = vmatpush1.msra.mxu0 0.0
        %1474 = vmatprep.subr.mxu0 0.0
        %1475 = vmatpush1.msra.mxu0 0.0
        %1476 = vmatprep.subr.mxu0 0.0
        %1477 = vmatpush1.msra.mxu0 0.0
        %1478 = vmatprep.subr.mxu0 0.0
        %1479 = vmatpush1.msra.mxu0 0.0
        %1480 = vmatprep.subr.mxu0 0.0
        %1481 = vmatpush1.msra.mxu0 0.0
        %1482 = vmatprep.subr.mxu0 0.0
        %1483 = vmatpush1.msra.mxu0 0.0
        %1484 = vmatprep.subr.mxu0 0.0
        %1485 = vmatpush1.msra.mxu0 0.0
        %1486 = vmatprep.subr.mxu0 0.0
        %1487 = vmatpush1.msra.mxu0 0.0
        %1488 = vmatprep.subr.mxu0 0.0
        %1489 = vmatpush1.msra.mxu0 0.0
        %1490 = vmatprep.subr.mxu0 0.0
        %1491 = vmatpush1.msra.mxu0 0.0
        %1492 = vmatprep.subr.mxu0 0.0
        %1493 = vmatpush1.msra.mxu0 0.0
        %1494 = vmatprep.subr.mxu0 0.0
        %1495 = vmatpush1.msra.mxu0 0.0
        %1496 = vmatprep.subr.mxu0 0.0
        %1497 = vmatpush1.msra.mxu0 0.0
        %1498 = vmatprep.subr.mxu0 0.0
        %1499 = vmatpush1.msra.mxu0 0.0
        %1500 = vmatprep.subr.mxu0 0.0
        %1501 = vmatpush1.msra.mxu0 0.0
        %1502 = vmatprep.subr.mxu0 0.0
        %1503 = vmatpush1.msra.mxu0 0.0
        %1504 = vmatprep.subr.mxu0 0.0
        %1505 = vmatpush1.msra.mxu0 0.0
        %1506 = vmatprep.subr.mxu0 0.0
        %1507 = vmatpush1.msra.mxu0 0.0
        %1508 = vmatprep.subr.mxu0 0.0
        %1509 = vmatpush1.msra.mxu0 0.0
        %1510 = vmatprep.subr.mxu0 0.0
        %1511 = vmatpush1.msra.mxu0 0.0
        %1512 = vmatprep.mubr.f32.mxu0 0.0
        %1513 = vmatmul.mubr.f32.gmra.mrb[0].mxu0 %v1437
        %v1514 = vpop.f32.mrb[0].mxu0
        %v1515 = vadd.f32 0.0, %v1514
        %v1516 = vpop.f32.mrb[0].mxu0
        %1517 = vmatprep.mubr.f32.mxu0 0.0
        %1518 = vmatmul.mubr.f32.gmra.mrb[0].mxu0 %v1440
        %v1519 = vpop.f32.mrb[0].mxu0
        %v1520 = vadd.f32 0.0, %v1519
        %v1521 = vpop.f32.mrb[0].mxu0
        %1522 = vmatprep.mubr.f32.mxu0 0.0
        %1523 = vmatmul.mubr.f32.gmra.mrb[0].mxu0 %v1443
        %v1524 = vpop.f32.mrb[0].mxu0
        %v1525 = vadd.f32 0.0, %v1524
        %v1526 = vpop.f32.mrb[0].mxu0
        %1527 = vmatprep.mubr.f32.mxu0 0.0
        %1528 = vmatmul.mubr.f32.gmra.mrb[0].mxu0 %v1446
        %v1529 = vpop.f32.mrb[0].mxu0
        %v1530 = vadd.f32 0.0, %v1529
        %v1531 = vpop.f32.mrb[0].mxu0
        %1532 = vdwg.mxu0
        %v1533 = vadd.s32 %v1433, 1
        %vm1534 = vcmp.eq.s32.totalorder %v1432, %v1533
        %v1535 = vsel %vm1534, 1.0, 0.0
        %1536 = vmatprep.subr.mxu0 0.0
        %1537 = vmatpush1.msra.mxu0 %v1426
        %1538 = vmatprep.subr.mxu0 0.0
        %1539 = vmatpush1.msra.mxu0 0.0
        %1540 = vmatprep.subr.mxu0 0.0
        %1541 = vmatpush1.msra.mxu0 0.0
        %1542 = vmatprep.subr.mxu0 0.0
        %1543 = vmatpush1.msra.mxu0 0.0
        %1544 = vmatprep.subr.mxu0 0.0
        %1545 = vmatpush1.msra.mxu0 0.0
        %1546 = vmatprep.subr.mxu0 0.0
        %1547 = vmatpush1.msra.mxu0 0.0
        %1548 = vmatprep.subr.mxu0 0.0
        %1549 = vmatpush1.msra.mxu0 0.0
        %1550 = vmatprep.subr.mxu0 0.0
        %1551 = vmatpush1.msra.mxu0 0.0
        %1552 = vmatprep.subr.mxu0 0.0
        %1553 = vmatpush1.msra.mxu0 0.0
        %1554 = vmatprep.subr.mxu0 0.0
        %1555 = vmatpush1.msra.mxu0 0.0
        %1556 = vmatprep.subr.mxu0 0.0
        %1557 = vmatpush1.msra.mxu0 0.0
        %1558 = vmatprep.subr.mxu0 0.0
        %1559 = vmatpush1.msra.mxu0 0.0
        %1560 = vmatprep.subr.mxu0 0.0
        %1561 = vmatpush1.msra.mxu0 0.0
        %1562 = vmatprep.subr.mxu0 0.0
        %1563 = vmatpush1.msra.mxu0 0.0
        %1564 = vmatprep.subr.mxu0 0.0
        %1565 = vmatpush1.msra.mxu0 0.0
        %1566 = vmatprep.subr.mxu0 0.0
        %1567 = vmatpush1.msra.mxu0 0.0
        %1568 = vmatprep.subr.mxu0 0.0
        %1569 = vmatpush1.msra.mxu0 0.0
        %1570 = vmatprep.subr.mxu0 0.0
        %1571 = vmatpush1.msra.mxu0 0.0
        %1572 = vmatprep.subr.mxu0 0.0
        %1573 = vmatpush1.msra.mxu0 0.0
        %1574 = vmatprep.subr.mxu0 0.0
        %1575 = vmatpush1.msra.mxu0 0.0
        %1576 = vmatprep.subr.mxu0 0.0
        %1577 = vmatpush1.msra.mxu0 0.0
        %1578 = vmatprep.subr.mxu0 0.0
        %1579 = vmatpush1.msra.mxu0 0.0
        %1580 = vmatprep.subr.mxu0 0.0
        %1581 = vmatpush1.msra.mxu0 0.0
        %1582 = vmatprep.subr.mxu0 0.0
        %1583 = vmatpush1.msra.mxu0 0.0
        %1584 = vmatprep.subr.mxu0 0.0
        %1585 = vmatpush1.msra.mxu0 0.0
        %1586 = vmatprep.subr.mxu0 0.0
        %1587 = vmatpush1.msra.mxu0 0.0
        %1588 = vmatprep.subr.mxu0 0.0
        %1589 = vmatpush1.msra.mxu0 0.0
        %1590 = vmatprep.subr.mxu0 0.0
        %1591 = vmatpush1.msra.mxu0 0.0
        %1592 = vmatprep.subr.mxu0 0.0
        %1593 = vmatpush1.msra.mxu0 0.0
        %1594 = vmatprep.subr.mxu0 0.0
        %1595 = vmatpush1.msra.mxu0 0.0
        %1596 = vmatprep.subr.mxu0 0.0
        %1597 = vmatpush1.msra.mxu0 0.0
        %1598 = vmatprep.subr.mxu0 0.0
        %1599 = vmatpush1.msra.mxu0 0.0
        %1600 = vmatprep.mubr.f32.mxu0 0.0
        %1601 = vmatmul.mubr.f32.gmra.mrb[0].mxu0 %v1437
        %v1602 = vpop.f32.mrb[0].mxu0
        %v1603 = vadd.f32 0.0, %v1602
        %v1604 = vpop.f32.mrb[0].mxu0
        %1605 = vmatprep.mubr.f32.mxu0 0.0
        %1606 = vmatmul.mubr.f32.gmra.mrb[0].mxu0 %v1440
        %v1607 = vpop.f32.mrb[0].mxu0
        %v1608 = vadd.f32 0.0, %v1607
        %v1609 = vpop.f32.mrb[0].mxu0
        %1610 = vmatprep.mubr.f32.mxu0 0.0
        %1611 = vmatmul.mubr.f32.gmra.mrb[0].mxu0 %v1443
        %v1612 = vpop.f32.mrb[0].mxu0
        %v1613 = vadd.f32 0.0, %v1612
        %v1614 = vpop.f32.mrb[0].mxu0
        %1615 = vmatprep.mubr.f32.mxu0 0.0
        %1616 = vmatmul.mubr.f32.gmra.mrb[0].mxu0 %v1446
        %v1617 = vpop.f32.mrb[0].mxu0
        %v1618 = vadd.f32 0.0, %v1617
        %v1619 = vpop.f32.mrb[0].mxu0
        %1620 = vdwg.mxu0
        %v1622 = vsel %vm514, %v1535, 0
        %1624 = vmatprep.subr.mxu0 0.0
        %1625 = vmatpush1.msra.mxu0 %v1603
        %1626 = vmatprep.subr.mxu0 0.0
        %1627 = vmatpush1.msra.mxu0 %v1608
        %1628 = vmatprep.subr.mxu0 0.0
        %1629 = vmatpush1.msra.mxu0 %v1613
        %1630 = vmatprep.subr.mxu0 0.0
        %1631 = vmatpush1.msra.mxu0 %v1618
        %1632 = vmatprep.subr.mxu0 0.0
        %1633 = vmatpush1.msra.mxu0 0.0
        %1634 = vmatprep.subr.mxu0 0.0
        %1635 = vmatpush1.msra.mxu0 0.0
        %1636 = vmatprep.subr.mxu0 0.0
        %1637 = vmatpush1.msra.mxu0 0.0
        %1638 = vmatprep.subr.mxu0 0.0
        %1639 = vmatpush1.msra.mxu0 0.0
        %1640 = vmatprep.subr.mxu0 0.0
        %1641 = vmatpush1.msra.mxu0 0.0
        %1642 = vmatprep.subr.mxu0 0.0
        %1643 = vmatpush1.msra.mxu0 0.0
        %1644 = vmatprep.subr.mxu0 0.0
        %1645 = vmatpush1.msra.mxu0 0.0
        %1646 = vmatprep.subr.mxu0 0.0
        %1647 = vmatpush1.msra.mxu0 0.0
        %1648 = vmatprep.subr.mxu0 0.0
        %1649 = vmatpush1.msra.mxu0 0.0
        %1650 = vmatprep.subr.mxu0 0.0
        %1651 = vmatpush1.msra.mxu0 0.0
        %1652 = vmatprep.subr.mxu0 0.0
        %1653 = vmatpush1.msra.mxu0 0.0
        %1654 = vmatprep.subr.mxu0 0.0
        %1655 = vmatpush1.msra.mxu0 0.0
        %1656 = vmatprep.subr.mxu0 0.0
        %1657 = vmatpush1.msra.mxu0 0.0
        %1658 = vmatprep.subr.mxu0 0.0
        %1659 = vmatpush1.msra.mxu0 0.0
        %1660 = vmatprep.subr.mxu0 0.0
        %1661 = vmatpush1.msra.mxu0 0.0
        %1662 = vmatprep.subr.mxu0 0.0
        %1663 = vmatpush1.msra.mxu0 0.0
        %1664 = vmatprep.subr.mxu0 0.0
        %1665 = vmatpush1.msra.mxu0 0.0
        %1666 = vmatprep.subr.mxu0 0.0
        %1667 = vmatpush1.msra.mxu0 0.0
        %1668 = vmatprep.subr.mxu0 0.0
        %1669 = vmatpush1.msra.mxu0 0.0
        %1670 = vmatprep.subr.mxu0 0.0
        %1671 = vmatpush1.msra.mxu0 0.0
        %1672 = vmatprep.subr.mxu0 0.0
        %1673 = vmatpush1.msra.mxu0 0.0
        %1674 = vmatprep.subr.mxu0 0.0
        %1675 = vmatpush1.msra.mxu0 0.0
        %1676 = vmatprep.subr.mxu0 0.0
        %1677 = vmatpush1.msra.mxu0 0.0
        %1678 = vmatprep.subr.mxu0 0.0
        %1679 = vmatpush1.msra.mxu0 0.0
        %1680 = vmatprep.subr.mxu0 0.0
        %1681 = vmatpush1.msra.mxu0 0.0
        %1682 = vmatprep.subr.mxu0 0.0
        %1683 = vmatpush1.msra.mxu0 0.0
        %1684 = vmatprep.subr.mxu0 0.0
        %1685 = vmatpush1.msra.mxu0 0.0
        %1686 = vmatprep.subr.mxu0 0.0
        %1687 = vmatpush1.msra.mxu0 0.0
        %1688 = vmatprep.mubr.f32.mxu0 0.0
        %1689 = vmatmul.mubr.f32.gmra.mrb[0].mxu0 %v1622
        %v1690 = vpop.f32.mrb[0].mxu0
        %v1691 = vadd.f32 0.0, %v1690
        %v1692 = vpop.f32.mrb[0].mxu0
        %1693 = vdwg.mxu0
        %v1695 = vsel %vm514, %v1435, 0
        %1697 = vmatprep.subr.mxu0 0.0
        %1698 = vmatpush1.msra.mxu0 %v1515
        %1699 = vmatprep.subr.mxu0 0.0
        %1700 = vmatpush1.msra.mxu0 %v1520
        %1701 = vmatprep.subr.mxu0 0.0
        %1702 = vmatpush1.msra.mxu0 %v1525
        %1703 = vmatprep.subr.mxu0 0.0
        %1704 = vmatpush1.msra.mxu0 %v1530
        %1705 = vmatprep.subr.mxu0 0.0
        %1706 = vmatpush1.msra.mxu0 0.0
        %1707 = vmatprep.subr.mxu0 0.0
        %1708 = vmatpush1.msra.mxu0 0.0
        %1709 = vmatprep.subr.mxu0 0.0
        %1710 = vmatpush1.msra.mxu0 0.0
        %1711 = vmatprep.subr.mxu0 0.0
        %1712 = vmatpush1.msra.mxu0 0.0
        %1713 = vmatprep.subr.mxu0 0.0
        %1714 = vmatpush1.msra.mxu0 0.0
        %1715 = vmatprep.subr.mxu0 0.0
        %1716 = vmatpush1.msra.mxu0 0.0
        %1717 = vmatprep.subr.mxu0 0.0
        %1718 = vmatpush1.msra.mxu0 0.0
        %1719 = vmatprep.subr.mxu0 0.0
        %1720 = vmatpush1.msra.mxu0 0.0
        %1721 = vmatprep.subr.mxu0 0.0
        %1722 = vmatpush1.msra.mxu0 0.0
        %1723 = vmatprep.subr.mxu0 0.0
        %1724 = vmatpush1.msra.mxu0 0.0
        %1725 = vmatprep.subr.mxu0 0.0
        %1726 = vmatpush1.msra.mxu0 0.0
        %1727 = vmatprep.subr.mxu0 0.0
        %1728 = vmatpush1.msra.mxu0 0.0
        %1729 = vmatprep.subr.mxu0 0.0
        %1730 = vmatpush1.msra.mxu0 0.0
        %1731 = vmatprep.subr.mxu0 0.0
        %1732 = vmatpush1.msra.mxu0 0.0
        %1733 = vmatprep.subr.mxu0 0.0
        %1734 = vmatpush1.msra.mxu0 0.0
        %1735 = vmatprep.subr.mxu0 0.0
        %1736 = vmatpush1.msra.mxu0 0.0
        %1737 = vmatprep.subr.mxu0 0.0
        %1738 = vmatpush1.msra.mxu0 0.0
        %1739 = vmatprep.subr.mxu0 0.0
        %1740 = vmatpush1.msra.mxu0 0.0
        %1741 = vmatprep.subr.mxu0 0.0
        %1742 = vmatpush1.msra.mxu0 0.0
        %1743 = vmatprep.subr.mxu0 0.0
        %1744 = vmatpush1.msra.mxu0 0.0
        %1745 = vmatprep.subr.mxu0 0.0
        %1746 = vmatpush1.msra.mxu0 0.0
        %1747 = vmatprep.subr.mxu0 0.0
        %1748 = vmatpush1.msra.mxu0 0.0
        %1749 = vmatprep.subr.mxu0 0.0
        %1750 = vmatpush1.msra.mxu0 0.0
        %1751 = vmatprep.subr.mxu0 0.0
        %1752 = vmatpush1.msra.mxu0 0.0
        %1753 = vmatprep.subr.mxu0 0.0
        %1754 = vmatpush1.msra.mxu0 0.0
        %1755 = vmatprep.subr.mxu0 0.0
        %1756 = vmatpush1.msra.mxu0 0.0
        %1757 = vmatprep.subr.mxu0 0.0
        %1758 = vmatpush1.msra.mxu0 0.0
        %1759 = vmatprep.subr.mxu0 0.0
        %1760 = vmatpush1.msra.mxu0 0.0
        %1761 = vmatprep.mubr.f32.mxu0 0.0
        %1762 = vmatmul.mubr.f32.gmra.mrb[0].mxu0 %v1695
        %v1763 = vpop.f32.mrb[0].mxu0
        %v1764 = vadd.f32 %v1691, %v1763
        %v1765 = vpop.f32.mrb[0].mxu0
        %1766 = vdwg.mxu0
        %v1767 = vadd.s32 %v1433, 2
        %vm1768 = vcmp.eq.s32.totalorder %v1432, %v1767
        %v1769 = vsel %vm1768, 1.0, 0.0
        %1770 = vmatprep.subr.mxu0 0.0
        %1771 = vmatpush1.msra.mxu0 %v1427
        %1772 = vmatprep.subr.mxu0 0.0
        %1773 = vmatpush1.msra.mxu0 0.0
        %1774 = vmatprep.subr.mxu0 0.0
        %1775 = vmatpush1.msra.mxu0 0.0
        %1776 = vmatprep.subr.mxu0 0.0
        %1777 = vmatpush1.msra.mxu0 0.0
        %1778 = vmatprep.subr.mxu0 0.0
        %1779 = vmatpush1.msra.mxu0 0.0
        %1780 = vmatprep.subr.mxu0 0.0
        %1781 = vmatpush1.msra.mxu0 0.0
        %1782 = vmatprep.subr.mxu0 0.0
        %1783 = vmatpush1.msra.mxu0 0.0
        %1784 = vmatprep.subr.mxu0 0.0
        %1785 = vmatpush1.msra.mxu0 0.0
        %1786 = vmatprep.subr.mxu0 0.0
        %1787 = vmatpush1.msra.mxu0 0.0
        %1788 = vmatprep.subr.mxu0 0.0
        %1789 = vmatpush1.msra.mxu0 0.0
        %1790 = vmatprep.subr.mxu0 0.0
        %1791 = vmatpush1.msra.mxu0 0.0
        %1792 = vmatprep.subr.mxu0 0.0
        %1793 = vmatpush1.msra.mxu0 0.0
        %1794 = vmatprep.subr.mxu0 0.0
        %1795 = vmatpush1.msra.mxu0 0.0
        %1796 = vmatprep.subr.mxu0 0.0
        %1797 = vmatpush1.msra.mxu0 0.0
        %1798 = vmatprep.subr.mxu0 0.0
        %1799 = vmatpush1.msra.mxu0 0.0
        %1800 = vmatprep.subr.mxu0 0.0
        %1801 = vmatpush1.msra.mxu0 0.0
        %1802 = vmatprep.subr.mxu0 0.0
        %1803 = vmatpush1.msra.mxu0 0.0
        %1804 = vmatprep.subr.mxu0 0.0
        %1805 = vmatpush1.msra.mxu0 0.0
        %1806 = vmatprep.subr.mxu0 0.0
        %1807 = vmatpush1.msra.mxu0 0.0
        %1808 = vmatprep.subr.mxu0 0.0
        %1809 = vmatpush1.msra.mxu0 0.0
        %1810 = vmatprep.subr.mxu0 0.0
        %1811 = vmatpush1.msra.mxu0 0.0
        %1812 = vmatprep.subr.mxu0 0.0
        %1813 = vmatpush1.msra.mxu0 0.0
        %1814 = vmatprep.subr.mxu0 0.0
        %1815 = vmatpush1.msra.mxu0 0.0
        %1816 = vmatprep.subr.mxu0 0.0
        %1817 = vmatpush1.msra.mxu0 0.0
        %1818 = vmatprep.subr.mxu0 0.0
        %1819 = vmatpush1.msra.mxu0 0.0
        %1820 = vmatprep.subr.mxu0 0.0
        %1821 = vmatpush1.msra.mxu0 0.0
        %1822 = vmatprep.subr.mxu0 0.0
        %1823 = vmatpush1.msra.mxu0 0.0
        %1824 = vmatprep.subr.mxu0 0.0
        %1825 = vmatpush1.msra.mxu0 0.0
        %1826 = vmatprep.subr.mxu0 0.0
        %1827 = vmatpush1.msra.mxu0 0.0
        %1828 = vmatprep.subr.mxu0 0.0
        %1829 = vmatpush1.msra.mxu0 0.0
        %1830 = vmatprep.subr.mxu0 0.0
        %1831 = vmatpush1.msra.mxu0 0.0
        %1832 = vmatprep.subr.mxu0 0.0
        %1833 = vmatpush1.msra.mxu0 0.0
        %1834 = vmatprep.mubr.f32.mxu0 0.0
        %1835 = vmatmul.mubr.f32.gmra.mrb[0].mxu0 %v1437
        %v1836 = vpop.f32.mrb[0].mxu0
        %v1837 = vadd.f32 0.0, %v1836
        %v1838 = vpop.f32.mrb[0].mxu0
        %1839 = vmatprep.mubr.f32.mxu0 0.0
        %1840 = vmatmul.mubr.f32.gmra.mrb[0].mxu0 %v1440
        %v1841 = vpop.f32.mrb[0].mxu0
        %v1842 = vadd.f32 0.0, %v1841
        %v1843 = vpop.f32.mrb[0].mxu0
        %1844 = vmatprep.mubr.f32.mxu0 0.0
        %1845 = vmatmul.mubr.f32.gmra.mrb[0].mxu0 %v1443
        %v1846 = vpop.f32.mrb[0].mxu0
        %v1847 = vadd.f32 0.0, %v1846
        %v1848 = vpop.f32.mrb[0].mxu0
        %1849 = vmatprep.mubr.f32.mxu0 0.0
        %1850 = vmatmul.mubr.f32.gmra.mrb[0].mxu0 %v1446
        %v1851 = vpop.f32.mrb[0].mxu0
        %v1852 = vadd.f32 0.0, %v1851
        %v1853 = vpop.f32.mrb[0].mxu0
        %1854 = vdwg.mxu0
        %v1856 = vsel %vm514, %v1769, 0
        %1858 = vmatprep.subr.mxu0 0.0
        %1859 = vmatpush1.msra.mxu0 %v1837
        %1860 = vmatprep.subr.mxu0 0.0
        %1861 = vmatpush1.msra.mxu0 %v1842
        %1862 = vmatprep.subr.mxu0 0.0
        %1863 = vmatpush1.msra.mxu0 %v1847
        %1864 = vmatprep.subr.mxu0 0.0
        %1865 = vmatpush1.msra.mxu0 %v1852
        %1866 = vmatprep.subr.mxu0 0.0
        %1867 = vmatpush1.msra.mxu0 0.0
        %1868 = vmatprep.subr.mxu0 0.0
        %1869 = vmatpush1.msra.mxu0 0.0
        %1870 = vmatprep.subr.mxu0 0.0
        %1871 = vmatpush1.msra.mxu0 0.0
        %1872 = vmatprep.subr.mxu0 0.0
        %1873 = vmatpush1.msra.mxu0 0.0
        %1874 = vmatprep.subr.mxu0 0.0
        %1875 = vmatpush1.msra.mxu0 0.0
        %1876 = vmatprep.subr.mxu0 0.0
        %1877 = vmatpush1.msra.mxu0 0.0
        %1878 = vmatprep.subr.mxu0 0.0
        %1879 = vmatpush1.msra.mxu0 0.0
        %1880 = vmatprep.subr.mxu0 0.0
        %1881 = vmatpush1.msra.mxu0 0.0
        %1882 = vmatprep.subr.mxu0 0.0
        %1883 = vmatpush1.msra.mxu0 0.0
        %1884 = vmatprep.subr.mxu0 0.0
        %1885 = vmatpush1.msra.mxu0 0.0
        %1886 = vmatprep.subr.mxu0 0.0
        %1887 = vmatpush1.msra.mxu0 0.0
        %1888 = vmatprep.subr.mxu0 0.0
        %1889 = vmatpush1.msra.mxu0 0.0
        %1890 = vmatprep.subr.mxu0 0.0
        %1891 = vmatpush1.msra.mxu0 0.0
        %1892 = vmatprep.subr.mxu0 0.0
        %1893 = vmatpush1.msra.mxu0 0.0
        %1894 = vmatprep.subr.mxu0 0.0
        %1895 = vmatpush1.msra.mxu0 0.0
        %1896 = vmatprep.subr.mxu0 0.0
        %1897 = vmatpush1.msra.mxu0 0.0
        %1898 = vmatprep.subr.mxu0 0.0
        %1899 = vmatpush1.msra.mxu0 0.0
        %1900 = vmatprep.subr.mxu0 0.0
        %1901 = vmatpush1.msra.mxu0 0.0
        %1902 = vmatprep.subr.mxu0 0.0
        %1903 = vmatpush1.msra.mxu0 0.0
        %1904 = vmatprep.subr.mxu0 0.0
        %1905 = vmatpush1.msra.mxu0 0.0
        %1906 = vmatprep.subr.mxu0 0.0
        %1907 = vmatpush1.msra.mxu0 0.0
        %1908 = vmatprep.subr.mxu0 0.0
        %1909 = vmatpush1.msra.mxu0 0.0
        %1910 = vmatprep.subr.mxu0 0.0
        %1911 = vmatpush1.msra.mxu0 0.0
        %1912 = vmatprep.subr.mxu0 0.0
        %1913 = vmatpush1.msra.mxu0 0.0
        %1914 = vmatprep.subr.mxu0 0.0
        %1915 = vmatpush1.msra.mxu0 0.0
        %1916 = vmatprep.subr.mxu0 0.0
        %1917 = vmatpush1.msra.mxu0 0.0
        %1918 = vmatprep.subr.mxu0 0.0
        %1919 = vmatpush1.msra.mxu0 0.0
        %1920 = vmatprep.subr.mxu0 0.0
        %1921 = vmatpush1.msra.mxu0 0.0
        %1922 = vmatprep.mubr.f32.mxu0 0.0
        %1923 = vmatmul.mubr.f32.gmra.mrb[0].mxu0 %v1856
        %v1924 = vpop.f32.mrb[0].mxu0
        %v1925 = vadd.f32 0.0, %v1924
        %v1926 = vpop.f32.mrb[0].mxu0
        %1927 = vdwg.mxu0
        %v1928 = vadd.f32 %v1764, %v1925
        %v1929 = vadd.s32 %v1433, 3
        %vm1930 = vcmp.eq.s32.totalorder %v1432, %v1929
        %v1931 = vsel %vm1930, 1.0, 0.0
        %1932 = vmatprep.subr.mxu0 0.0
        %1933 = vmatpush1.msra.mxu0 %v1428
        %1934 = vmatprep.subr.mxu0 0.0
        %1935 = vmatpush1.msra.mxu0 0.0
        %1936 = vmatprep.subr.mxu0 0.0
        %1937 = vmatpush1.msra.mxu0 0.0
        %1938 = vmatprep.subr.mxu0 0.0
        %1939 = vmatpush1.msra.mxu0 0.0
        %1940 = vmatprep.subr.mxu0 0.0
        %1941 = vmatpush1.msra.mxu0 0.0
        %1942 = vmatprep.subr.mxu0 0.0
        %1943 = vmatpush1.msra.mxu0 0.0
        %1944 = vmatprep.subr.mxu0 0.0
        %1945 = vmatpush1.msra.mxu0 0.0
        %1946 = vmatprep.subr.mxu0 0.0
        %1947 = vmatpush1.msra.mxu0 0.0
        %1948 = vmatprep.subr.mxu0 0.0
        %1949 = vmatpush1.msra.mxu0 0.0
        %1950 = vmatprep.subr.mxu0 0.0
        %1951 = vmatpush1.msra.mxu0 0.0
        %1952 = vmatprep.subr.mxu0 0.0
        %1953 = vmatpush1.msra.mxu0 0.0
        %1954 = vmatprep.subr.mxu0 0.0
        %1955 = vmatpush1.msra.mxu0 0.0
        %1956 = vmatprep.subr.mxu0 0.0
        %1957 = vmatpush1.msra.mxu0 0.0
        %1958 = vmatprep.subr.mxu0 0.0
        %1959 = vmatpush1.msra.mxu0 0.0
        %1960 = vmatprep.subr.mxu0 0.0
        %1961 = vmatpush1.msra.mxu0 0.0
        %1962 = vmatprep.subr.mxu0 0.0
        %1963 = vmatpush1.msra.mxu0 0.0
        %1964 = vmatprep.subr.mxu0 0.0
        %1965 = vmatpush1.msra.mxu0 0.0
        %1966 = vmatprep.subr.mxu0 0.0
        %1967 = vmatpush1.msra.mxu0 0.0
        %1968 = vmatprep.subr.mxu0 0.0
        %1969 = vmatpush1.msra.mxu0 0.0
        %1970 = vmatprep.subr.mxu0 0.0
        %1971 = vmatpush1.msra.mxu0 0.0
        %1972 = vmatprep.subr.mxu0 0.0
        %1973 = vmatpush1.msra.mxu0 0.0
        %1974 = vmatprep.subr.mxu0 0.0
        %1975 = vmatpush1.msra.mxu0 0.0
        %1976 = vmatprep.subr.mxu0 0.0
        %1977 = vmatpush1.msra.mxu0 0.0
        %1978 = vmatprep.subr.mxu0 0.0
        %1979 = vmatpush1.msra.mxu0 0.0
        %1980 = vmatprep.subr.mxu0 0.0
        %1981 = vmatpush1.msra.mxu0 0.0
        %1982 = vmatprep.subr.mxu0 0.0
        %1983 = vmatpush1.msra.mxu0 0.0
        %1984 = vmatprep.subr.mxu0 0.0
        %1985 = vmatpush1.msra.mxu0 0.0
        %1986 = vmatprep.subr.mxu0 0.0
        %1987 = vmatpush1.msra.mxu0 0.0
        %1988 = vmatprep.subr.mxu0 0.0
        %1989 = vmatpush1.msra.mxu0 0.0
        %1990 = vmatprep.subr.mxu0 0.0
        %1991 = vmatpush1.msra.mxu0 0.0
        %1992 = vmatprep.subr.mxu0 0.0
        %1993 = vmatpush1.msra.mxu0 0.0
        %1994 = vmatprep.subr.mxu0 0.0
        %1995 = vmatpush1.msra.mxu0 0.0
        %1996 = vmatprep.mubr.f32.mxu0 0.0
        %1997 = vmatmul.mubr.f32.gmra.mrb[0].mxu0 %v1437
        %v1998 = vpop.f32.mrb[0].mxu0
        %v1999 = vadd.f32 0.0, %v1998
        %v2000 = vpop.f32.mrb[0].mxu0
        %2001 = vmatprep.mubr.f32.mxu0 0.0
        %2002 = vmatmul.mubr.f32.gmra.mrb[0].mxu0 %v1440
        %v2003 = vpop.f32.mrb[0].mxu0
        %v2004 = vadd.f32 0.0, %v2003
        %v2005 = vpop.f32.mrb[0].mxu0
        %2006 = vmatprep.mubr.f32.mxu0 0.0
        %2007 = vmatmul.mubr.f32.gmra.mrb[0].mxu0 %v1443
        %v2008 = vpop.f32.mrb[0].mxu0
        %v2009 = vadd.f32 0.0, %v2008
        %v2010 = vpop.f32.mrb[0].mxu0
        %2011 = vmatprep.mubr.f32.mxu0 0.0
        %2012 = vmatmul.mubr.f32.gmra.mrb[0].mxu0 %v1446
        %v2013 = vpop.f32.mrb[0].mxu0
        %v2014 = vadd.f32 0.0, %v2013
        %v2015 = vpop.f32.mrb[0].mxu0
        %2016 = vdwg.mxu0
        %v2018 = vsel %vm514, %v1931, 0
        %2020 = vmatprep.subr.mxu0 0.0
        %2021 = vmatpush1.msra.mxu0 %v1999
        %2022 = vmatprep.subr.mxu0 0.0
        %2023 = vmatpush1.msra.mxu0 %v2004
        %2024 = vmatprep.subr.mxu0 0.0
        %2025 = vmatpush1.msra.mxu0 %v2009
        %2026 = vmatprep.subr.mxu0 0.0
        %2027 = vmatpush1.msra.mxu0 %v2014
        %2028 = vmatprep.subr.mxu0 0.0
        %2029 = vmatpush1.msra.mxu0 0.0
        %2030 = vmatprep.subr.mxu0 0.0
        %2031 = vmatpush1.msra.mxu0 0.0
        %2032 = vmatprep.subr.mxu0 0.0
        %2033 = vmatpush1.msra.mxu0 0.0
        %2034 = vmatprep.subr.mxu0 0.0
        %2035 = vmatpush1.msra.mxu0 0.0
        %2036 = vmatprep.subr.mxu0 0.0
        %2037 = vmatpush1.msra.mxu0 0.0
        %2038 = vmatprep.subr.mxu0 0.0
        %2039 = vmatpush1.msra.mxu0 0.0
        %2040 = vmatprep.subr.mxu0 0.0
        %2041 = vmatpush1.msra.mxu0 0.0
        %2042 = vmatprep.subr.mxu0 0.0
        %2043 = vmatpush1.msra.mxu0 0.0
        %2044 = vmatprep.subr.mxu0 0.0
        %2045 = vmatpush1.msra.mxu0 0.0
        %2046 = vmatprep.subr.mxu0 0.0
        %2047 = vmatpush1.msra.mxu0 0.0
        %2048 = vmatprep.subr.mxu0 0.0
        %2049 = vmatpush1.msra.mxu0 0.0
        %2050 = vmatprep.subr.mxu0 0.0
        %2051 = vmatpush1.msra.mxu0 0.0
        %2052 = vmatprep.subr.mxu0 0.0
        %2053 = vmatpush1.msra.mxu0 0.0
        %2054 = vmatprep.subr.mxu0 0.0
        %2055 = vmatpush1.msra.mxu0 0.0
        %2056 = vmatprep.subr.mxu0 0.0
        %2057 = vmatpush1.msra.mxu0 0.0
        %2058 = vmatprep.subr.mxu0 0.0
        %2059 = vmatpush1.msra.mxu0 0.0
        %2060 = vmatprep.subr.mxu0 0.0
        %2061 = vmatpush1.msra.mxu0 0.0
        %2062 = vmatprep.subr.mxu0 0.0
        %2063 = vmatpush1.msra.mxu0 0.0
        %2064 = vmatprep.subr.mxu0 0.0
        %2065 = vmatpush1.msra.mxu0 0.0
        %2066 = vmatprep.subr.mxu0 0.0
        %2067 = vmatpush1.msra.mxu0 0.0
        %2068 = vmatprep.subr.mxu0 0.0
        %2069 = vmatpush1.msra.mxu0 0.0
        %2070 = vmatprep.subr.mxu0 0.0
        %2071 = vmatpush1.msra.mxu0 0.0
        %2072 = vmatprep.subr.mxu0 0.0
        %2073 = vmatpush1.msra.mxu0 0.0
        %2074 = vmatprep.subr.mxu0 0.0
        %2075 = vmatpush1.msra.mxu0 0.0
        %2076 = vmatprep.subr.mxu0 0.0
        %2077 = vmatpush1.msra.mxu0 0.0
        %2078 = vmatprep.subr.mxu0 0.0
        %2079 = vmatpush1.msra.mxu0 0.0
        %2080 = vmatprep.subr.mxu0 0.0
        %2081 = vmatpush1.msra.mxu0 0.0
        %2082 = vmatprep.subr.mxu0 0.0
        %2083 = vmatpush1.msra.mxu0 0.0
        %2084 = vmatprep.mubr.f32.mxu0 0.0
        %2085 = vmatmul.mubr.f32.gmra.mrb[0].mxu0 %v2018
        %v2086 = vpop.f32.mrb[0].mxu0
        %v2087 = vadd.f32 0.0, %v2086
        %v2088 = vpop.f32.mrb[0].mxu0
        %2089 = vdwg.mxu0
        %v2090 = vadd.f32 %v1928, %v2087
        %v2091 = vld [vmem:[%s10] sm:$0x1]
        %v2093 = vlaneseq
        %v2094 = vshrl.u32 %v2093, 7
        %v2095 = vsub.s32 0, %v2094
        %v2096 = vrot.slane %v2091, %v2095
        %v2098 = vadd.f32 %v2090, %v2096
        %vm2099 = vcmask 113664
        %2100 = vst.msk [vmem:[%s499] sm:$0xff] %vm2099, %v2098
        %s2101 = sand.u32 %s286, 1
        %s2102 = scalar_lea.sflag [#allocation5], %s2101
        %s2103 = sand.u32 %s286, 1
        %s2104 = smul.addr %s2103, 8
        %s2105 = scalar_lea.vmem [#allocation12], %s2104
        // Predicated region
        $region85: #{tpu_custom_call.1} parent=63 // pred_check
          %p2106 = pneg %p296
        $region86: #{tpu_custom_call.1} parent=63 // pred_check_branch
          %2108 = sbr.rel (%p2106) target = $region88
        $region87: #{tpu_custom_call.1} parent=63 // pred_region
          %s2110 = ssub.s32 128, 128
          %2111 = vsyncadd %s2102, %s2110
          %s2112 = smul.addr %s32, 128
          %s2113 = scalar_lea.hbm %s11, %s2112
          %s2115 = sshll.u32 %s2105, 4
          %s2116 = int_to_ptr.vmem [resolvable:$true] %s2115
          %2118 = dma.vmem_to_hbm [thread:$0]  %s2116, 128, %s2113, %s2102
        $region88: #{tpu_custom_call.1} parent=63 // pred_fallthru
          _
      $region64: #{tpu_custom_call.1} parent=5 // pred_fallthru
        _
      %p2119 = scmp.le.s32.totalorder 2, %s27
      // Predicated region
      $region89: #{tpu_custom_call.1} parent=5 // pred_check
        %p2120 = pneg %p2119
      $region90: #{tpu_custom_call.1} parent=5 // pred_check_branch
        %2122 = sbr.rel (%p2120) target = $region92
      $region91: #{tpu_custom_call.1} parent=5 // pred_region
        %s2123 = ssub.s32 %s27, 2
        // Predicated region
        $region93: #{tpu_custom_call.1} parent=91 // pred_check
          %p2124 = pneg %p302
        $region94: #{tpu_custom_call.1} parent=91 // pred_check_branch
          %2126 = sbr.rel (%p2124) target = $region96
        $region95: #{tpu_custom_call.1} parent=91 // pred_region
          %s2127 = sand.u32 %s287, 1
          %s2128 = scalar_lea.sflag [#allocation5], %s2127
          %s2129 = sand.u32 %s287, 1
          %s2130 = smul.addr %s2129, 8
          %s2131 = scalar_lea.vmem [#allocation12], %s2130
          %2132 = dma.done %s2128, 128
        $region96: #{tpu_custom_call.1} parent=91 // pred_fallthru
          _
      $region92: #{tpu_custom_call.1} parent=5 // pred_fallthru
        _
    $region6: #{tpu_custom_call.1} parent=1 // loop_footer
      %s31 = sadd.s32 1, %s27
    $region7: #{tpu_custom_call.1} parent=1 // loop_footer_branch
      %26 = sbr.rel target = $region3
    $region8: #{tpu_custom_call.1} parent=1 // loop_exit
      _
    %2133 = vsyncpa [#allocation4], 1
    %s2134 = scalar_lea.sflag [#allocation4], 1
    %2135 = vsyncpa %s2134, 1
    %2136 = vsyncpa [#allocation7], 1
    %s2137 = scalar_lea.sflag [#allocation7], 1
    %2138 = vsyncpa %s2137, 1
    %2139 = vsyncpa [#allocation10], 1
    %2140 = vsyncpa [#allocation5], 1
    %s2141 = scalar_lea.sflag [#allocation5], 1
    %2142 = vsyncpa %s2141, 1

</llo_original>
